<compile_context>
chip_gen: v5e
topology: v5e:2x2
jax: 0.10.0
libtpu: 0.0.40
codegen_flags: <defaults>
</compile_context>

<pallas_src>
import functools

import jax
import jax.numpy as jnp
from jax import lax
from jax.experimental import pallas as pl
from jax.experimental.pallas import tpu as pltpu

# ---- module hyper-parameters (small shapes consistent with the module) ----
LANE_LEN = 16          # V (lane_len)
HIDDEN_DIM = 32        # hidden_dim
DEPTH = 3
TOKENS_MLP_DIM = 32    # T (tokens_mlp_dim)
CHANNELS_MLP_DIM = 64  # C (channels_mlp_dim)
EPS = 1e-5
DEFAULT_BLK = 256      # polylines batched per grid step
MATMUL_DTYPE = jnp.bfloat16   # MXU operand dtype (accumulation stays f32)


def _gelu(x):
    # TODO(synk): nn.GELU defaults to the exact erf formulation; tanh approx used
    # here (max abs dev ~1e-3); the pure-JAX reference uses the same approx.
    c = 0.7978845608028654  # sqrt(2/pi)
    return 0.5 * x * (1.0 + jnp.tanh(c * (x + 0.044715 * x * x * x)))


def _layer_norm(h, w, b):
    # single-pass variance: E[x^2] - mu^2 (one lane reduce less, reduces pipeline)
    mu = jnp.mean(h, axis=-1, keepdims=True)
    ms = jnp.mean(h * h, axis=-1, keepdims=True)
    var = ms - mu * mu
    return (h - mu) * lax.rsqrt(var + EPS) * w + b


def _mlp(h, w1, b1, w2, b2):
    # bf16 (or f32) operands, f32 accumulation + f32 bias / activation
    h = jnp.dot(h.astype(w1.dtype), w1, preferred_element_type=jnp.float32) + b1
    h = _gelu(h)
    return jnp.dot(h.astype(w2.dtype), w2, preferred_element_type=jnp.float32) + b2


# ---- token MLP, flat formulation (preferred): one big matmul per mix -------
def _token_mlp_flat(h, w1, b1, w2, b2):
    """h: (blk, T_in, C) -> (blk, T_out, C) via flat (blk*C, T) matmuls."""
    blk, t_in, c = h.shape
    hb = jnp.swapaxes(h, 1, 2).reshape(blk * c, t_in)   # (blk*C, T_in)
    hb = _mlp(hb, w1, b1, w2, b2)                        # (blk*C, T_out)
    return jnp.swapaxes(hb.reshape(blk, c, hb.shape[-1]), 1, 2)


# ---- token MLP, previously-validated batched fallback -----------------------
def _token_mix_batched(h, wt, bc):
    blk = h.shape[0]
    wb = jnp.broadcast_to(wt, (blk,) + wt.shape)
    y = lax.dot_general(wb, h.astype(wt.dtype), (((2,), (1,)), ((0,), (0,))),
                        preferred_element_type=jnp.float32)
    return y + bc


def _token_mlp_batched(h, w1t, b1c, w2t, b2c):
    return _token_mix_batched(_gelu(_token_mix_batched(h, w1t, b1c)), w2t, b2c)


# --------------------------- Pallas kernel ---------------------------------
def _lane_kernel(x_ref, bias_ref,
                 cp_w1t, cp_b1, cp_w2, cp_b2,
                 tp_w1, tp_b1, tp_w2, tp_b2,
                 tn_w, tn_b, tm_w1, tm_b1, tm_w2, tm_b2,
                 cn_w, cn_b, cm_w1, cm_b1, cm_w2, cm_b2,
                 fn_w, fn_b, ep_w1, ep_b1, ep_w2, ep_b2,
                 out_ref, *, flat_token_mix=True):
    V, T, C = LANE_LEN, TOKENS_MLP_DIM, CHANNELS_MLP_DIM
    blk = bias_ref.shape[0]

    # ---- channel pre-project -------------------------------------------------
    # Geometry arrives lane-dense as (8, blk*V).  First matmul stays f32 (raw
    # coordinate precision + it is ~5% of the MACs); one 2-D transpose then puts
    # the data in the (point rows, channel lanes) layout used everywhere else.
    g = jnp.dot(cp_w1t[...], x_ref[...], preferred_element_type=jnp.float32)  # (C, blk*V)
    h = _gelu(g.T + cp_b1[...])                                               # (blk*V, C)
    w2 = cp_w2[...]
    h = jnp.dot(h.astype(w2.dtype), w2, preferred_element_type=jnp.float32) + cp_b2[...]
    h = h.reshape(blk, V, C)

    # ---- token pre-project: (blk, V, C) -> (blk, T, C) ------------------------
    if flat_token_mix:
        h = _token_mlp_flat(h, tp_w1[...], tp_b1[...], tp_w2[...], tp_b2[...])
    else:
        h = _token_mlp_batched(h, tp_w1[...], tp_b1[...], tp_w2[...], tp_b2[...])

    # ---- MLP-Mixer blocks (DropPath = identity at inference) ------------------
    for d in range(DEPTH):
        y = _layer_norm(h, tn_w[d], tn_b[d])
        if flat_token_mix:
            h = h + _token_mlp_flat(y, tm_w1[d], tm_b1[d], tm_w2[d], tm_b2[d])
        else:
            h = h + _token_mlp_batched(y, tm_w1[d], tm_b1[d], tm_w2[d], tm_b2[d])
        y = _layer_norm(h, cn_w[d], cn_b[d])
        y = _mlp(y.reshape(blk * T, C),
                 cm_w1[d], cm_b1[d], cm_w2[d], cm_b2[d])       # flat (blk*T, C) matmuls
        h = h + y.reshape(blk, T, C)

    # ---- head ------------------------------------------------------------------
    feat = jnp.mean(h, axis=1)                                  # (blk, C) token mean
    feat = feat + bias_ref[...]                                 # speed + traffic emb
    feat = _layer_norm(feat, fn_w[...], fn_b[...])
    feat = _mlp(feat, ep_w1[...], ep_b1[...], ep_w2[...], ep_b2[...])   # (blk, H)
    # TODO(synk): H=32 -> masked 32/128-lane stores; a (blk//4, 128) packed out tile
    # would be lane-dense but needs a minor-dim reshape (skipped, modest win).
    out_ref[...] = feat.astype(out_ref.dtype)


# --------------------------- parameters ------------------------------------
def init_params(key):
    V, T, C, H, D = LANE_LEN, TOKENS_MLP_DIM, CHANNELS_MLP_DIM, HIDDEN_DIM, DEPTH
    params = {}
    keys = iter(jax.random.split(key, 64))

    def add(name, shape, scale):
        params[name] = scale * jax.random.normal(next(keys), shape, jnp.float32)

    add("cp_w1", (8, C), 0.3); add("cp_b1", (1, C), 0.05)
    add("cp_w2", (C, C), 0.1); add("cp_b2", (1, C), 0.05)
    add("tp_w1", (V, T), 0.2); add("tp_b1", (1, T), 0.05)
    add("tp_w2", (T, T), 0.15); add("tp_b2", (1, T), 0.05)
    params["tn_w"] = jnp.ones((D, 1, C), jnp.float32)
    params["tn_b"] = jnp.zeros((D, 1, C), jnp.float32)
    add("tm_w1", (D, T, T), 0.15); add("tm_b1", (D, 1, T), 0.05)
    add("tm_w2", (D, T, T), 0.15); add("tm_b2", (D, 1, T), 0.05)
    params["cn_w"] = jnp.ones((D, 1, C), jnp.float32)
    params["cn_b"] = jnp.zeros((D, 1, C), jnp.float32)
    add("cm_w1", (D, C, C), 0.1); add("cm_b1", (D, 1, C), 0.05)
    add("cm_w2", (D, C, C), 0.1); add("cm_b2", (D, 1, C), 0.05)
    params["fn_w"] = jnp.ones((1, C), jnp.float32)
    params["fn_b"] = jnp.zeros((1, C), jnp.float32)
    add("ep_w1", (C, H), 0.1); add("ep_b1", (1, H), 0.05)
    add("ep_w2", (H, H), 0.15); add("ep_b2", (1, H), 0.05)
    add("sl_w", (1, C), 0.1); add("sl_b", (1, C), 0.05)
    add("unk_w", (1, C), 0.1)
    add("tr_w", (4, C), 0.3); add("tr_b", (1, C), 0.05)
    return params


def _kernel_weights(params, flat_token_mix):
    """Kernel-argument tuple in signature order.

    flat path : untransposed (T_in, T_out) token weights + row biases, bf16 matrices.
    fallback  : the previously validated layout (pre-transposed token weights,
                column biases), all f32.
    """
    p = params
    mm = (lambda w: w.astype(MATMUL_DTYPE)) if flat_token_mix else (lambda w: w)
    if flat_token_mix:
        tok = (mm(p["tp_w1"]), p["tp_b1"], mm(p["tp_w2"]), p["tp_b2"],
               p["tn_w"], p["tn_b"],
               mm(p["tm_w1"]), p["tm_b1"], mm(p["tm_w2"]), p["tm_b2"])
    else:
        tok = (p["tp_w1"].T, p["tp_b1"].reshape(-1, 1),
               p["tp_w2"].T, p["tp_b2"].reshape(-1, 1),
               p["tn_w"], p["tn_b"],
               jnp.swapaxes(p["tm_w1"], 1, 2), jnp.swapaxes(p["tm_b1"], 1, 2),
               jnp.swapaxes(p["tm_w2"], 1, 2), jnp.swapaxes(p["tm_b2"], 1, 2))
    return (
        p["cp_w1"].T,                      # (C, 8), kept f32 (raw-coordinate precision)
        p["cp_b1"], mm(p["cp_w2"]), p["cp_b2"],
    ) + tok + (
        p["cn_w"], p["cn_b"],
        mm(p["cm_w1"]), p["cm_b1"], mm(p["cm_w2"]), p["cm_b2"],
        p["fn_w"], p["fn_b"],
        mm(p["ep_w1"]), p["ep_b1"], mm(p["ep_w2"]), p["ep_b2"],
    )


def _choose_blk(n, requested):
    """Multiple of 8, <= requested, and (when possible) >= 2 grid steps for v7x."""
    up8 = lambda v: max(8, ((v + 7) // 8) * 8)
    blk = min(int(requested), up8(n))
    blk = max(8, (blk // 8) * 8)
    while blk > 8 and up8(n) <= blk:          # would give a single grid step
        blk = max(8, ((blk // 2) // 8) * 8)
    return blk


# --------------------------- wrapper ----------------------------------------
def lane_fusion_encoder_forward(params, x, speed_limit, has_speed_limit,
                                blk=DEFAULT_BLK, flat_token_mix=True):
    B, P, V, _ = x.shape
    assert V == LANE_LEN
    N = B * P
    C, H = CHANNELS_MLP_DIM, HIDDEN_DIM

    x = x.astype(jnp.float32)
    x_geo = x[..., :8]                                        # (B, P, V, 8)
    traffic = x[:, :, 0, 8:].reshape(N, 4)
    speed = speed_limit.reshape(N, 1).astype(jnp.float32)
    has_speed = has_speed_limit.reshape(N, 1).astype(jnp.float32)

    # ---- plain-XLA glue: masks and pos (matches PyTorch slicing / trig) ----
    mask_v = jnp.sum(x_geo != 0.0, axis=-1) == 0              # (B, P, V)
    mask_p = jnp.sum(~mask_v, axis=-1) == 0                   # (B, P)
    pos_raw = x_geo[:, :, V // 2, :7]
    heading = jnp.arctan2(pos_raw[..., 3], pos_raw[..., 2])
    pos = jnp.concatenate([
        pos_raw[..., :2],
        jnp.cos(heading)[..., None],
        jnp.sin(heading)[..., None],
        jnp.zeros(pos_raw[..., :2].shape, jnp.float32),
        jnp.ones(pos_raw[..., :1].shape, jnp.float32),
    ], axis=-1)                                                # (B, P, 7)

    # speed / traffic embeddings precomputed in XLA -> single (N, C) bias input
    sl_emb = speed * params["sl_w"] + params["sl_b"]
    speed_emb = has_speed * sl_emb + (1.0 - has_speed) * params["unk_w"]
    traffic_emb = traffic @ params["tr_w"] + params["tr_b"]
    side_bias = speed_emb + traffic_emb                        # (N, C)

    # ---- tiling: BLK polylines per grid step, lane-dense geometry tiles ------
    blk = _choose_blk(N, blk)
    n_pad = ((N + blk - 1) // blk) * blk
    pad = n_pad - N

    x2d = jnp.pad(x_geo.reshape(N * V, 8), ((0, pad * V), (0, 0)))
    x_t = x2d.T                                                # (8, n_pad*V) lane-dense
    side_bias = jnp.pad(side_bias, ((0, pad), (0, 0)))

    weights = _kernel_weights(params, flat_token_mix)

    def const_spec(w):
        nd = w.ndim
        return pl.BlockSpec(w.shape, lambda n, _nd=nd: (0,) * _nd)

    in_specs = [
        pl.BlockSpec((8, blk * V), lambda n: (0, n)),          # geometry (lane-dense)
        pl.BlockSpec((blk, C), lambda n: (n, 0)),              # side bias
    ] + [const_spec(w) for w in weights]
    # TODO(synk): weights are still default double-buffered; Buffered(1) / packed
    # weight slabs would save a few hundred KB of VMEM (minor, skipped).

    kern = functools.partial(_lane_kernel, flat_token_mix=flat_token_mix)
    out = pl.pallas_call(
        kern,
        out_shape=jax.ShapeDtypeStruct((n_pad, H), jnp.float32),
        grid_spec=pltpu.PrefetchScalarGridSpec(
            num_scalar_prefetch=0,
            grid=(n_pad // blk,),
            in_specs=in_specs,
            out_specs=pl.BlockSpec((blk, H), lambda n: (n, 0)),
        ),
        compiler_params=pltpu.CompilerParams(
            dimension_semantics=("parallel",),
            vmem_limit_bytes=48 * 1024 * 1024,   # fits v7x (64 MiB) as well as v5e/v6e
        ),
    )(x_t, side_bias, *weights)

    # zero invalid polylines (matches the PyTorch gather/scatter semantics)
    valid = (~mask_p).reshape(N, 1).astype(jnp.float32)
    out = out[:N] * valid
    return out.reshape(B, P, H), mask_p, pos


# --------------------------- pure-JAX reference (f32) ------------------------
def reference_forward(params, x, speed_limit, has_speed_limit):
    p = params
    B, P, V, _ = x.shape
    N = B * P
    x = x.astype(jnp.float32)
    x_geo = x[..., :8].reshape(N, V, 8)
    traffic = x[:, :, 0, 8:].reshape(N, 4)
    speed = speed_limit.reshape(N, 1).astype(jnp.float32)
    has_speed = has_speed_limit.reshape(N, 1).astype(jnp.float32)

    valid = (jnp.sum(x_geo != 0.0, axis=(1, 2)) > 0).astype(jnp.float32)

    h = _mlp(x_geo, p["cp_w1"], p["cp_b1"], p["cp_w2"], p["cp_b2"])
    h = jnp.swapaxes(h, 1, 2)
    h = _mlp(h, p["tp_w1"], p["tp_b1"], p["tp_w2"], p["tp_b2"])
    h = jnp.swapaxes(h, 1, 2)
    for d in range(DEPTH):
        y = _layer_norm(h, p["tn_w"][d], p["tn_b"][d])
        y = _mlp(jnp.swapaxes(y, 1, 2), p["tm_w1"][d], p["tm_b1"][d],
                 p["tm_w2"][d], p["tm_b2"][d])
        h = h + jnp.swapaxes(y, 1, 2)
        y = _layer_norm(h, p["cn_w"][d], p["cn_b"][d])
        h = h + _mlp(y, p["cm_w1"][d], p["cm_b1"][d], p["cm_w2"][d], p["cm_b2"][d])
    feat = jnp.mean(h, axis=1)
    sl_emb = speed * p["sl_w"] + p["sl_b"]
    speed_emb = has_speed * sl_emb + (1.0 - has_speed) * p["unk_w"]
    traffic_emb = traffic @ p["tr_w"] + p["tr_b"]
    feat = feat + speed_emb + traffic_emb
    feat = _layer_norm(feat, p["fn_w"], p["fn_b"])
    feat = _mlp(feat, p["ep_w1"], p["ep_b1"], p["ep_w2"], p["ep_b2"])
    feat = feat * valid[:, None]
    return feat.reshape(B, P, HIDDEN_DIM)


# --------------------------- demo / test ------------------------------------
if __name__ == "__main__":
    key = jax.random.PRNGKey(0)
    k_param, k_x, k_sl, k_hs = jax.random.split(key, 4)
    params = init_params(k_param)

    B, P, V = 2, 8, LANE_LEN
    x = jax.random.normal(k_x, (B, P, V, 12), jnp.float32)
    # make a couple of polylines fully invalid (all-zero) to exercise mask_p
    invalid = jnp.zeros((B, P), bool).at[0, 6].set(True).at[1, 3].set(True)
    x = jnp.where(invalid[:, :, None, None], 0.0, x)
    speed_limit = jax.random.uniform(k_sl, (B, P, 1), jnp.float32) * 20.0
    has_speed_limit = jax.random.bernoulli(k_hs, 0.5, (B, P, 1))

    fwd_fast = jax.jit(functools.partial(lane_fusion_encoder_forward, params,
                                         flat_token_mix=True))
    try:
        out, mask_p, pos = fwd_fast(x, speed_limit, has_speed_limit)
        jax.block_until_ready((out, mask_p, pos))
    except Exception:
        # Safety net: previously-validated batched token-mix formulation (f32).
        fwd_safe = jax.jit(functools.partial(lane_fusion_encoder_forward, params,
                                             flat_token_mix=False))
        out, mask_p, pos = fwd_safe(x, speed_limit, has_speed_limit)
        jax.block_until_ready((out, mask_p, pos))

    ref = reference_forward(params, x, speed_limit, has_speed_limit)
    err = float(jnp.max(jnp.abs(out - ref)))
    # bf16 MXU operands (f32 accumulation) vs. an all-f32 reference: allow 5e-2 abs.
    tol = 5e-2 if MATMUL_DTYPE == jnp.bfloat16 else 1e-2
    assert err < tol, f"kernel/reference mismatch: {err}"
    assert bool(jnp.all(mask_p == invalid)), "mask_p mismatch"
    assert out.shape == (B, P, HIDDEN_DIM) and pos.shape == (B, P, 7)

    print("KERNEL_OK")
</pallas_src>

<mosaic_0001>
module attributes {stable_mosaic.version = 11 : i64} {
  func.func @_lane_kernel(%arg0: i32, %arg1: memref<8x128xf32, #tpu.memory_space<vmem>>, %arg2: memref<8x64xf32, #tpu.memory_space<vmem>>, %arg3: memref<64x8xf32, #tpu.memory_space<vmem>>, %arg4: memref<1x64xf32, #tpu.memory_space<vmem>>, %arg5: memref<64x64xbf16, #tpu.memory_space<vmem>>, %arg6: memref<1x64xf32, #tpu.memory_space<vmem>>, %arg7: memref<16x32xbf16, #tpu.memory_space<vmem>>, %arg8: memref<1x32xf32, #tpu.memory_space<vmem>>, %arg9: memref<32x32xbf16, #tpu.memory_space<vmem>>, %arg10: memref<1x32xf32, #tpu.memory_space<vmem>>, %arg11: memref<3x1x64xf32, #tpu.memory_space<vmem>>, %arg12: memref<3x1x64xf32, #tpu.memory_space<vmem>>, %arg13: memref<3x32x32xbf16, #tpu.memory_space<vmem>>, %arg14: memref<3x1x32xf32, #tpu.memory_space<vmem>>, %arg15: memref<3x32x32xbf16, #tpu.memory_space<vmem>>, %arg16: memref<3x1x32xf32, #tpu.memory_space<vmem>>, %arg17: memref<3x1x64xf32, #tpu.memory_space<vmem>>, %arg18: memref<3x1x64xf32, #tpu.memory_space<vmem>>, %arg19: memref<3x64x64xbf16, #tpu.memory_space<vmem>>, %arg20: memref<3x1x64xf32, #tpu.memory_space<vmem>>, %arg21: memref<3x64x64xbf16, #tpu.memory_space<vmem>>, %arg22: memref<3x1x64xf32, #tpu.memory_space<vmem>>, %arg23: memref<1x64xf32, #tpu.memory_space<vmem>>, %arg24: memref<1x64xf32, #tpu.memory_space<vmem>>, %arg25: memref<64x32xbf16, #tpu.memory_space<vmem>>, %arg26: memref<1x32xf32, #tpu.memory_space<vmem>>, %arg27: memref<32x32xbf16, #tpu.memory_space<vmem>>, %arg28: memref<1x32xf32, #tpu.memory_space<vmem>>, %arg29: memref<8x32xf32, #tpu.memory_space<vmem>>) attributes {dimension_semantics = [#tpu.dimension_semantics<parallel>], iteration_bounds = array<i64: 2>, scalar_prefetch = 0 : i64, scratch_operands = 0 : i64, tpu.core_type = #tpu.core_type<tc>, window_params = [{transform_indices = @transform_0, window_bounds = array<i64: 8, 128>}, {transform_indices = @transform_1, window_bounds = array<i64: 8, 64>}, {pipeline_mode = #tpu.pipeline_mode<synchronous>, transform_indices = @transform_2, window_bounds = array<i64: 64, 8>}, {pipeline_mode = #tpu.pipeline_mode<synchronous>, transform_indices = @transform_3, window_bounds = array<i64: 1, 64>}, {pipeline_mode = #tpu.pipeline_mode<synchronous>, transform_indices = @transform_4, window_bounds = array<i64: 64, 64>}, {pipeline_mode = #tpu.pipeline_mode<synchronous>, transform_indices = @transform_5, window_bounds = array<i64: 1, 64>}, {pipeline_mode = #tpu.pipeline_mode<synchronous>, transform_indices = @transform_6, window_bounds = array<i64: 16, 32>}, {pipeline_mode = #tpu.pipeline_mode<synchronous>, transform_indices = @transform_7, window_bounds = array<i64: 1, 32>}, {pipeline_mode = #tpu.pipeline_mode<synchronous>, transform_indices = @transform_8, window_bounds = array<i64: 32, 32>}, {pipeline_mode = #tpu.pipeline_mode<synchronous>, transform_indices = @transform_9, window_bounds = array<i64: 1, 32>}, {pipeline_mode = #tpu.pipeline_mode<synchronous>, transform_indices = @transform_10, window_bounds = array<i64: 3, 1, 64>}, {pipeline_mode = #tpu.pipeline_mode<synchronous>, transform_indices = @transform_11, window_bounds = array<i64: 3, 1, 64>}, {pipeline_mode = #tpu.pipeline_mode<synchronous>, transform_indices = @transform_12, window_bounds = array<i64: 3, 32, 32>}, {pipeline_mode = #tpu.pipeline_mode<synchronous>, transform_indices = @transform_13, window_bounds = array<i64: 3, 1, 32>}, {pipeline_mode = #tpu.pipeline_mode<synchronous>, transform_indices = @transform_14, window_bounds = array<i64: 3, 32, 32>}, {pipeline_mode = #tpu.pipeline_mode<synchronous>, transform_indices = @transform_15, window_bounds = array<i64: 3, 1, 32>}, {pipeline_mode = #tpu.pipeline_mode<synchronous>, transform_indices = @transform_16, window_bounds = array<i64: 3, 1, 64>}, {pipeline_mode = #tpu.pipeline_mode<synchronous>, transform_indices = @transform_17, window_bounds = array<i64: 3, 1, 64>}, {pipeline_mode = #tpu.pipeline_mode<synchronous>, transform_indices = @transform_18, window_bounds = array<i64: 3, 64, 64>}, {pipeline_mode = #tpu.pipeline_mode<synchronous>, transform_indices = @transform_19, window_bounds = array<i64: 3, 1, 64>}, {pipeline_mode = #tpu.pipeline_mode<synchronous>, transform_indices = @transform_20, window_bounds = array<i64: 3, 64, 64>}, {pipeline_mode = #tpu.pipeline_mode<synchronous>, transform_indices = @transform_21, window_bounds = array<i64: 3, 1, 64>}, {pipeline_mode = #tpu.pipeline_mode<synchronous>, transform_indices = @transform_22, window_bounds = array<i64: 1, 64>}, {pipeline_mode = #tpu.pipeline_mode<synchronous>, transform_indices = @transform_23, window_bounds = array<i64: 1, 64>}, {pipeline_mode = #tpu.pipeline_mode<synchronous>, transform_indices = @transform_24, window_bounds = array<i64: 64, 32>}, {pipeline_mode = #tpu.pipeline_mode<synchronous>, transform_indices = @transform_25, window_bounds = array<i64: 1, 32>}, {pipeline_mode = #tpu.pipeline_mode<synchronous>, transform_indices = @transform_26, window_bounds = array<i64: 32, 32>}, {pipeline_mode = #tpu.pipeline_mode<synchronous>, transform_indices = @transform_27, window_bounds = array<i64: 1, 32>}, {transform_indices = @transform_28, window_bounds = array<i64: 8, 32>}]} {
    %c0 = arith.constant 0 : index
    %c0_0 = arith.constant 0 : index
    %0 = vector.load %arg3[%c0, %c0_0] : memref<64x8xf32, #tpu.memory_space<vmem>>, vector<64x8xf32>
    %c0_1 = arith.constant 0 : index
    %c0_2 = arith.constant 0 : index
    %1 = vector.load %arg1[%c0_1, %c0_2] : memref<8x128xf32, #tpu.memory_space<vmem>>, vector<8x128xf32>
    %cst = arith.constant dense<0.000000e+00> : vector<64x128xf32>
    %2 = tpu.matmul %0, %1, %cst {dimension_numbers = #tpu.dot_dimension_numbers<[1], [0], [0], [1], [0, 0, 1, 1], [], []>} : vector<64x8xf32>, vector<8x128xf32>, vector<64x128xf32> -> vector<64x128xf32>
    %3 = tpu.transpose %2, [1, 0] : vector<64x128xf32> -> vector<128x64xf32>
    %c0_3 = arith.constant 0 : index
    %c0_4 = arith.constant 0 : index
    %4 = vector.load %arg4[%c0_3, %c0_4] : memref<1x64xf32, #tpu.memory_space<vmem>>, vector<1x64xf32>
    %5 = vector.broadcast %4 : vector<1x64xf32> to vector<128x64xf32>
    %6 = arith.addf %3, %5 : vector<128x64xf32>
    %cst_5 = arith.constant 5.000000e-01 : f32
    %7 = vector.broadcast %cst_5 : f32 to vector<128x64xf32>
    %8 = arith.mulf %7, %6 : vector<128x64xf32>
    %cst_6 = arith.constant 4.471500e-02 : f32
    %9 = vector.broadcast %cst_6 : f32 to vector<128x64xf32>
    %10 = arith.mulf %9, %6 : vector<128x64xf32>
    %11 = arith.mulf %10, %6 : vector<128x64xf32>
    %12 = arith.mulf %11, %6 : vector<128x64xf32>
    %13 = arith.addf %6, %12 : vector<128x64xf32>
    %cst_7 = arith.constant 0.797884583 : f32
    %14 = vector.broadcast %cst_7 : f32 to vector<128x64xf32>
    %15 = arith.mulf %14, %13 : vector<128x64xf32>
    %16 = math.tanh %15 : vector<128x64xf32>
    %cst_8 = arith.constant 1.000000e+00 : f32
    %17 = vector.broadcast %cst_8 : f32 to vector<128x64xf32>
    %18 = arith.addf %17, %16 : vector<128x64xf32>
    %19 = arith.mulf %8, %18 : vector<128x64xf32>
    %c0_9 = arith.constant 0 : index
    %c0_10 = arith.constant 0 : index
    %20 = vector.load %arg5[%c0_9, %c0_10] : memref<64x64xbf16, #tpu.memory_space<vmem>>, vector<64x64xbf16>
    %21 = arith.truncf %19 : vector<128x64xf32> to vector<128x64xbf16>
    %cst_11 = arith.constant dense<0.000000e+00> : vector<128x64xf32>
    %22 = tpu.matmul %21, %20, %cst_11 {dimension_numbers = #tpu.dot_dimension_numbers<[1], [0], [0], [1], [0, 0, 1, 1], [], []>} : vector<128x64xbf16>, vector<64x64xbf16>, vector<128x64xf32> -> vector<128x64xf32>
    %c0_12 = arith.constant 0 : index
    %c0_13 = arith.constant 0 : index
    %23 = vector.load %arg6[%c0_12, %c0_13] : memref<1x64xf32, #tpu.memory_space<vmem>>, vector<1x64xf32>
    %24 = vector.broadcast %23 : vector<1x64xf32> to vector<128x64xf32>
    %25 = arith.addf %22, %24 : vector<128x64xf32>
    %26 = vector.shape_cast %25 : vector<128x64xf32> to vector<8x16x64xf32>
    %c0_14 = arith.constant 0 : index
    %c0_15 = arith.constant 0 : index
    %27 = vector.load %arg7[%c0_14, %c0_15] : memref<16x32xbf16, #tpu.memory_space<vmem>>, vector<16x32xbf16>
    %c0_16 = arith.constant 0 : index
    %c0_17 = arith.constant 0 : index
    %28 = vector.load %arg8[%c0_16, %c0_17] : memref<1x32xf32, #tpu.memory_space<vmem>>, vector<1x32xf32>
    %c0_18 = arith.constant 0 : index
    %c0_19 = arith.constant 0 : index
    %29 = vector.load %arg9[%c0_18, %c0_19] : memref<32x32xbf16, #tpu.memory_space<vmem>>, vector<32x32xbf16>
    %c0_20 = arith.constant 0 : index
    %c0_21 = arith.constant 0 : index
    %30 = vector.load %arg10[%c0_20, %c0_21] : memref<1x32xf32, #tpu.memory_space<vmem>>, vector<1x32xf32>
    %31 = tpu.transpose %26, [0, 2, 1] : vector<8x16x64xf32> -> vector<8x64x16xf32>
    %32 = vector.shape_cast %31 : vector<8x64x16xf32> to vector<512x16xf32>
    %33 = arith.truncf %32 : vector<512x16xf32> to vector<512x16xbf16>
    %cst_22 = arith.constant dense<0.000000e+00> : vector<512x32xf32>
    %34 = tpu.matmul %33, %27, %cst_22 {dimension_numbers = #tpu.dot_dimension_numbers<[1], [0], [0], [1], [0, 0, 1, 1], [], []>} : vector<512x16xbf16>, vector<16x32xbf16>, vector<512x32xf32> -> vector<512x32xf32>
    %35 = vector.broadcast %28 : vector<1x32xf32> to vector<512x32xf32>
    %36 = arith.addf %34, %35 : vector<512x32xf32>
    %cst_23 = arith.constant 5.000000e-01 : f32
    %37 = vector.broadcast %cst_23 : f32 to vector<512x32xf32>
    %38 = arith.mulf %37, %36 : vector<512x32xf32>
    %cst_24 = arith.constant 4.471500e-02 : f32
    %39 = vector.broadcast %cst_24 : f32 to vector<512x32xf32>
    %40 = arith.mulf %39, %36 : vector<512x32xf32>
    %41 = arith.mulf %40, %36 : vector<512x32xf32>
    %42 = arith.mulf %41, %36 : vector<512x32xf32>
    %43 = arith.addf %36, %42 : vector<512x32xf32>
    %cst_25 = arith.constant 0.797884583 : f32
    %44 = vector.broadcast %cst_25 : f32 to vector<512x32xf32>
    %45 = arith.mulf %44, %43 : vector<512x32xf32>
    %46 = math.tanh %45 : vector<512x32xf32>
    %cst_26 = arith.constant 1.000000e+00 : f32
    %47 = vector.broadcast %cst_26 : f32 to vector<512x32xf32>
    %48 = arith.addf %47, %46 : vector<512x32xf32>
    %49 = arith.mulf %38, %48 : vector<512x32xf32>
    %50 = arith.truncf %49 : vector<512x32xf32> to vector<512x32xbf16>
    %cst_27 = arith.constant dense<0.000000e+00> : vector<512x32xf32>
    %51 = tpu.matmul %50, %29, %cst_27 {dimension_numbers = #tpu.dot_dimension_numbers<[1], [0], [0], [1], [0, 0, 1, 1], [], []>} : vector<512x32xbf16>, vector<32x32xbf16>, vector<512x32xf32> -> vector<512x32xf32>
    %52 = vector.broadcast %30 : vector<1x32xf32> to vector<512x32xf32>
    %53 = arith.addf %51, %52 : vector<512x32xf32>
    %54 = vector.shape_cast %53 : vector<512x32xf32> to vector<8x64x32xf32>
    %55 = tpu.transpose %54, [0, 2, 1] : vector<8x64x32xf32> -> vector<8x32x64xf32>
    %c0_28 = arith.constant 0 : index
    %c0_29 = arith.constant 0 : index
    %c0_30 = arith.constant 0 : index
    %56 = vector.load %arg11[%c0_28, %c0_29, %c0_30] : memref<3x1x64xf32, #tpu.memory_space<vmem>>, vector<1x1x64xf32>
    %57 = vector.shape_cast %56 : vector<1x1x64xf32> to vector<1x64xf32>
    %c0_31 = arith.constant 0 : index
    %c0_32 = arith.constant 0 : index
    %c0_33 = arith.constant 0 : index
    %58 = vector.load %arg12[%c0_31, %c0_32, %c0_33] : memref<3x1x64xf32, #tpu.memory_space<vmem>>, vector<1x1x64xf32>
    %59 = vector.shape_cast %58 : vector<1x1x64xf32> to vector<1x64xf32>
    %cst_34 = arith.constant dense<0.000000e+00> : vector<8x32xf32>
    %60 = vector.multi_reduction <add>, %55, %cst_34 [2] : vector<8x32x64xf32> to vector<8x32xf32>
    %61 = vector.shape_cast %60 : vector<8x32xf32> to vector<8x32x1xf32>
    %cst_35 = arith.constant 6.400000e+01 : f32
    %62 = vector.broadcast %cst_35 : f32 to vector<8x32x1xf32>
    %63 = arith.divf %61, %62 : vector<8x32x1xf32>
    %64 = arith.mulf %55, %55 : vector<8x32x64xf32>
    %cst_36 = arith.constant dense<0.000000e+00> : vector<8x32xf32>
    %65 = vector.multi_reduction <add>, %64, %cst_36 [2] : vector<8x32x64xf32> to vector<8x32xf32>
    %66 = vector.shape_cast %65 : vector<8x32xf32> to vector<8x32x1xf32>
    %cst_37 = arith.constant 6.400000e+01 : f32
    %67 = vector.broadcast %cst_37 : f32 to vector<8x32x1xf32>
    %68 = arith.divf %66, %67 : vector<8x32x1xf32>
    %69 = arith.mulf %63, %63 : vector<8x32x1xf32>
    %70 = arith.subf %68, %69 : vector<8x32x1xf32>
    %71 = vector.broadcast %63 : vector<8x32x1xf32> to vector<8x32x64xf32>
    %72 = arith.subf %55, %71 : vector<8x32x64xf32>
    %cst_38 = arith.constant 9.99999974E-6 : f32
    %73 = vector.broadcast %cst_38 : f32 to vector<8x32x1xf32>
    %74 = arith.addf %70, %73 : vector<8x32x1xf32>
    %75 = math.rsqrt %74 : vector<8x32x1xf32>
    %76 = vector.broadcast %75 : vector<8x32x1xf32> to vector<8x32x64xf32>
    %77 = arith.mulf %72, %76 : vector<8x32x64xf32>
    %78 = vector.shape_cast %57 : vector<1x64xf32> to vector<1x1x64xf32>
    %79 = vector.broadcast %78 : vector<1x1x64xf32> to vector<8x32x64xf32>
    %80 = arith.mulf %77, %79 : vector<8x32x64xf32>
    %81 = vector.shape_cast %59 : vector<1x64xf32> to vector<1x1x64xf32>
    %82 = vector.broadcast %81 : vector<1x1x64xf32> to vector<8x32x64xf32>
    %83 = arith.addf %80, %82 : vector<8x32x64xf32>
    %c0_39 = arith.constant 0 : index
    %c0_40 = arith.constant 0 : index
    %c0_41 = arith.constant 0 : index
    %84 = vector.load %arg13[%c0_39, %c0_40, %c0_41] : memref<3x32x32xbf16, #tpu.memory_space<vmem>>, vector<1x32x32xbf16>
    %85 = vector.shape_cast %84 : vector<1x32x32xbf16> to vector<32x32xbf16>
    %c0_42 = arith.constant 0 : index
    %c0_43 = arith.constant 0 : index
    %c0_44 = arith.constant 0 : index
    %86 = vector.load %arg14[%c0_42, %c0_43, %c0_44] : memref<3x1x32xf32, #tpu.memory_space<vmem>>, vector<1x1x32xf32>
    %87 = vector.shape_cast %86 : vector<1x1x32xf32> to vector<1x32xf32>
    %c0_45 = arith.constant 0 : index
    %c0_46 = arith.constant 0 : index
    %c0_47 = arith.constant 0 : index
    %88 = vector.load %arg15[%c0_45, %c0_46, %c0_47] : memref<3x32x32xbf16, #tpu.memory_space<vmem>>, vector<1x32x32xbf16>
    %89 = vector.shape_cast %88 : vector<1x32x32xbf16> to vector<32x32xbf16>
    %c0_48 = arith.constant 0 : index
    %c0_49 = arith.constant 0 : index
    %c0_50 = arith.constant 0 : index
    %90 = vector.load %arg16[%c0_48, %c0_49, %c0_50] : memref<3x1x32xf32, #tpu.memory_space<vmem>>, vector<1x1x32xf32>
    %91 = vector.shape_cast %90 : vector<1x1x32xf32> to vector<1x32xf32>
    %92 = tpu.transpose %83, [0, 2, 1] : vector<8x32x64xf32> -> vector<8x64x32xf32>
    %93 = vector.shape_cast %92 : vector<8x64x32xf32> to vector<512x32xf32>
    %94 = arith.truncf %93 : vector<512x32xf32> to vector<512x32xbf16>
    %cst_51 = arith.constant dense<0.000000e+00> : vector<512x32xf32>
    %95 = tpu.matmul %94, %85, %cst_51 {dimension_numbers = #tpu.dot_dimension_numbers<[1], [0], [0], [1], [0, 0, 1, 1], [], []>} : vector<512x32xbf16>, vector<32x32xbf16>, vector<512x32xf32> -> vector<512x32xf32>
    %96 = vector.broadcast %87 : vector<1x32xf32> to vector<512x32xf32>
    %97 = arith.addf %95, %96 : vector<512x32xf32>
    %cst_52 = arith.constant 5.000000e-01 : f32
    %98 = vector.broadcast %cst_52 : f32 to vector<512x32xf32>
    %99 = arith.mulf %98, %97 : vector<512x32xf32>
    %cst_53 = arith.constant 4.471500e-02 : f32
    %100 = vector.broadcast %cst_53 : f32 to vector<512x32xf32>
    %101 = arith.mulf %100, %97 : vector<512x32xf32>
    %102 = arith.mulf %101, %97 : vector<512x32xf32>
    %103 = arith.mulf %102, %97 : vector<512x32xf32>
    %104 = arith.addf %97, %103 : vector<512x32xf32>
    %cst_54 = arith.constant 0.797884583 : f32
    %105 = vector.broadcast %cst_54 : f32 to vector<512x32xf32>
    %106 = arith.mulf %105, %104 : vector<512x32xf32>
    %107 = math.tanh %106 : vector<512x32xf32>
    %cst_55 = arith.constant 1.000000e+00 : f32
    %108 = vector.broadcast %cst_55 : f32 to vector<512x32xf32>
    %109 = arith.addf %108, %107 : vector<512x32xf32>
    %110 = arith.mulf %99, %109 : vector<512x32xf32>
    %111 = arith.truncf %110 : vector<512x32xf32> to vector<512x32xbf16>
    %cst_56 = arith.constant dense<0.000000e+00> : vector<512x32xf32>
    %112 = tpu.matmul %111, %89, %cst_56 {dimension_numbers = #tpu.dot_dimension_numbers<[1], [0], [0], [1], [0, 0, 1, 1], [], []>} : vector<512x32xbf16>, vector<32x32xbf16>, vector<512x32xf32> -> vector<512x32xf32>
    %113 = vector.broadcast %91 : vector<1x32xf32> to vector<512x32xf32>
    %114 = arith.addf %112, %113 : vector<512x32xf32>
    %115 = vector.shape_cast %114 : vector<512x32xf32> to vector<8x64x32xf32>
    %116 = tpu.transpose %115, [0, 2, 1] : vector<8x64x32xf32> -> vector<8x32x64xf32>
    %117 = arith.addf %55, %116 : vector<8x32x64xf32>
    %c0_57 = arith.constant 0 : index
    %c0_58 = arith.constant 0 : index
    %c0_59 = arith.constant 0 : index
    %118 = vector.load %arg17[%c0_57, %c0_58, %c0_59] : memref<3x1x64xf32, #tpu.memory_space<vmem>>, vector<1x1x64xf32>
    %119 = vector.shape_cast %118 : vector<1x1x64xf32> to vector<1x64xf32>
    %c0_60 = arith.constant 0 : index
    %c0_61 = arith.constant 0 : index
    %c0_62 = arith.constant 0 : index
    %120 = vector.load %arg18[%c0_60, %c0_61, %c0_62] : memref<3x1x64xf32, #tpu.memory_space<vmem>>, vector<1x1x64xf32>
    %121 = vector.shape_cast %120 : vector<1x1x64xf32> to vector<1x64xf32>
    %cst_63 = arith.constant dense<0.000000e+00> : vector<8x32xf32>
    %122 = vector.multi_reduction <add>, %117, %cst_63 [2] : vector<8x32x64xf32> to vector<8x32xf32>
    %123 = vector.shape_cast %122 : vector<8x32xf32> to vector<8x32x1xf32>
    %cst_64 = arith.constant 6.400000e+01 : f32
    %124 = vector.broadcast %cst_64 : f32 to vector<8x32x1xf32>
    %125 = arith.divf %123, %124 : vector<8x32x1xf32>
    %126 = arith.mulf %117, %117 : vector<8x32x64xf32>
    %cst_65 = arith.constant dense<0.000000e+00> : vector<8x32xf32>
    %127 = vector.multi_reduction <add>, %126, %cst_65 [2] : vector<8x32x64xf32> to vector<8x32xf32>
    %128 = vector.shape_cast %127 : vector<8x32xf32> to vector<8x32x1xf32>
    %cst_66 = arith.constant 6.400000e+01 : f32
    %129 = vector.broadcast %cst_66 : f32 to vector<8x32x1xf32>
    %130 = arith.divf %128, %129 : vector<8x32x1xf32>
    %131 = arith.mulf %125, %125 : vector<8x32x1xf32>
    %132 = arith.subf %130, %131 : vector<8x32x1xf32>
    %133 = vector.broadcast %125 : vector<8x32x1xf32> to vector<8x32x64xf32>
    %134 = arith.subf %117, %133 : vector<8x32x64xf32>
    %cst_67 = arith.constant 9.99999974E-6 : f32
    %135 = vector.broadcast %cst_67 : f32 to vector<8x32x1xf32>
    %136 = arith.addf %132, %135 : vector<8x32x1xf32>
    %137 = math.rsqrt %136 : vector<8x32x1xf32>
    %138 = vector.broadcast %137 : vector<8x32x1xf32> to vector<8x32x64xf32>
    %139 = arith.mulf %134, %138 : vector<8x32x64xf32>
    %140 = vector.shape_cast %119 : vector<1x64xf32> to vector<1x1x64xf32>
    %141 = vector.broadcast %140 : vector<1x1x64xf32> to vector<8x32x64xf32>
    %142 = arith.mulf %139, %141 : vector<8x32x64xf32>
    %143 = vector.shape_cast %121 : vector<1x64xf32> to vector<1x1x64xf32>
    %144 = vector.broadcast %143 : vector<1x1x64xf32> to vector<8x32x64xf32>
    %145 = arith.addf %142, %144 : vector<8x32x64xf32>
    %146 = vector.shape_cast %145 : vector<8x32x64xf32> to vector<256x64xf32>
    %c0_68 = arith.constant 0 : index
    %c0_69 = arith.constant 0 : index
    %c0_70 = arith.constant 0 : index
    %147 = vector.load %arg19[%c0_68, %c0_69, %c0_70] : memref<3x64x64xbf16, #tpu.memory_space<vmem>>, vector<1x64x64xbf16>
    %148 = vector.shape_cast %147 : vector<1x64x64xbf16> to vector<64x64xbf16>
    %c0_71 = arith.constant 0 : index
    %c0_72 = arith.constant 0 : index
    %c0_73 = arith.constant 0 : index
    %149 = vector.load %arg20[%c0_71, %c0_72, %c0_73] : memref<3x1x64xf32, #tpu.memory_space<vmem>>, vector<1x1x64xf32>
    %150 = vector.shape_cast %149 : vector<1x1x64xf32> to vector<1x64xf32>
    %c0_74 = arith.constant 0 : index
    %c0_75 = arith.constant 0 : index
    %c0_76 = arith.constant 0 : index
    %151 = vector.load %arg21[%c0_74, %c0_75, %c0_76] : memref<3x64x64xbf16, #tpu.memory_space<vmem>>, vector<1x64x64xbf16>
    %152 = vector.shape_cast %151 : vector<1x64x64xbf16> to vector<64x64xbf16>
    %c0_77 = arith.constant 0 : index
    %c0_78 = arith.constant 0 : index
    %c0_79 = arith.constant 0 : index
    %153 = vector.load %arg22[%c0_77, %c0_78, %c0_79] : memref<3x1x64xf32, #tpu.memory_space<vmem>>, vector<1x1x64xf32>
    %154 = vector.shape_cast %153 : vector<1x1x64xf32> to vector<1x64xf32>
    %155 = arith.truncf %146 : vector<256x64xf32> to vector<256x64xbf16>
    %cst_80 = arith.constant dense<0.000000e+00> : vector<256x64xf32>
    %156 = tpu.matmul %155, %148, %cst_80 {dimension_numbers = #tpu.dot_dimension_numbers<[1], [0], [0], [1], [0, 0, 1, 1], [], []>} : vector<256x64xbf16>, vector<64x64xbf16>, vector<256x64xf32> -> vector<256x64xf32>
    %157 = vector.broadcast %150 : vector<1x64xf32> to vector<256x64xf32>
    %158 = arith.addf %156, %157 : vector<256x64xf32>
    %cst_81 = arith.constant 5.000000e-01 : f32
    %159 = vector.broadcast %cst_81 : f32 to vector<256x64xf32>
    %160 = arith.mulf %159, %158 : vector<256x64xf32>
    %cst_82 = arith.constant 4.471500e-02 : f32
    %161 = vector.broadcast %cst_82 : f32 to vector<256x64xf32>
    %162 = arith.mulf %161, %158 : vector<256x64xf32>
    %163 = arith.mulf %162, %158 : vector<256x64xf32>
    %164 = arith.mulf %163, %158 : vector<256x64xf32>
    %165 = arith.addf %158, %164 : vector<256x64xf32>
    %cst_83 = arith.constant 0.797884583 : f32
    %166 = vector.broadcast %cst_83 : f32 to vector<256x64xf32>
    %167 = arith.mulf %166, %165 : vector<256x64xf32>
    %168 = math.tanh %167 : vector<256x64xf32>
    %cst_84 = arith.constant 1.000000e+00 : f32
    %169 = vector.broadcast %cst_84 : f32 to vector<256x64xf32>
    %170 = arith.addf %169, %168 : vector<256x64xf32>
    %171 = arith.mulf %160, %170 : vector<256x64xf32>
    %172 = arith.truncf %171 : vector<256x64xf32> to vector<256x64xbf16>
    %cst_85 = arith.constant dense<0.000000e+00> : vector<256x64xf32>
    %173 = tpu.matmul %172, %152, %cst_85 {dimension_numbers = #tpu.dot_dimension_numbers<[1], [0], [0], [1], [0, 0, 1, 1], [], []>} : vector<256x64xbf16>, vector<64x64xbf16>, vector<256x64xf32> -> vector<256x64xf32>
    %174 = vector.broadcast %154 : vector<1x64xf32> to vector<256x64xf32>
    %175 = arith.addf %173, %174 : vector<256x64xf32>
    %176 = vector.shape_cast %175 : vector<256x64xf32> to vector<8x32x64xf32>
    %177 = arith.addf %117, %176 : vector<8x32x64xf32>
    %c1 = arith.constant 1 : index
    %c0_86 = arith.constant 0 : index
    %c0_87 = arith.constant 0 : index
    %178 = vector.load %arg11[%c1, %c0_86, %c0_87] : memref<3x1x64xf32, #tpu.memory_space<vmem>>, vector<1x1x64xf32>
    %179 = vector.shape_cast %178 : vector<1x1x64xf32> to vector<1x64xf32>
    %c1_88 = arith.constant 1 : index
    %c0_89 = arith.constant 0 : index
    %c0_90 = arith.constant 0 : index
    %180 = vector.load %arg12[%c1_88, %c0_89, %c0_90] : memref<3x1x64xf32, #tpu.memory_space<vmem>>, vector<1x1x64xf32>
    %181 = vector.shape_cast %180 : vector<1x1x64xf32> to vector<1x64xf32>
    %cst_91 = arith.constant dense<0.000000e+00> : vector<8x32xf32>
    %182 = vector.multi_reduction <add>, %177, %cst_91 [2] : vector<8x32x64xf32> to vector<8x32xf32>
    %183 = vector.shape_cast %182 : vector<8x32xf32> to vector<8x32x1xf32>
    %cst_92 = arith.constant 6.400000e+01 : f32
    %184 = vector.broadcast %cst_92 : f32 to vector<8x32x1xf32>
    %185 = arith.divf %183, %184 : vector<8x32x1xf32>
    %186 = arith.mulf %177, %177 : vector<8x32x64xf32>
    %cst_93 = arith.constant dense<0.000000e+00> : vector<8x32xf32>
    %187 = vector.multi_reduction <add>, %186, %cst_93 [2] : vector<8x32x64xf32> to vector<8x32xf32>
    %188 = vector.shape_cast %187 : vector<8x32xf32> to vector<8x32x1xf32>
    %cst_94 = arith.constant 6.400000e+01 : f32
    %189 = vector.broadcast %cst_94 : f32 to vector<8x32x1xf32>
    %190 = arith.divf %188, %189 : vector<8x32x1xf32>
    %191 = arith.mulf %185, %185 : vector<8x32x1xf32>
    %192 = arith.subf %190, %191 : vector<8x32x1xf32>
    %193 = vector.broadcast %185 : vector<8x32x1xf32> to vector<8x32x64xf32>
    %194 = arith.subf %177, %193 : vector<8x32x64xf32>
    %cst_95 = arith.constant 9.99999974E-6 : f32
    %195 = vector.broadcast %cst_95 : f32 to vector<8x32x1xf32>
    %196 = arith.addf %192, %195 : vector<8x32x1xf32>
    %197 = math.rsqrt %196 : vector<8x32x1xf32>
    %198 = vector.broadcast %197 : vector<8x32x1xf32> to vector<8x32x64xf32>
    %199 = arith.mulf %194, %198 : vector<8x32x64xf32>
    %200 = vector.shape_cast %179 : vector<1x64xf32> to vector<1x1x64xf32>
    %201 = vector.broadcast %200 : vector<1x1x64xf32> to vector<8x32x64xf32>
    %202 = arith.mulf %199, %201 : vector<8x32x64xf32>
    %203 = vector.shape_cast %181 : vector<1x64xf32> to vector<1x1x64xf32>
    %204 = vector.broadcast %203 : vector<1x1x64xf32> to vector<8x32x64xf32>
    %205 = arith.addf %202, %204 : vector<8x32x64xf32>
    %c1_96 = arith.constant 1 : index
    %c0_97 = arith.constant 0 : index
    %c0_98 = arith.constant 0 : index
    %206 = vector.load %arg13[%c1_96, %c0_97, %c0_98] : memref<3x32x32xbf16, #tpu.memory_space<vmem>>, vector<1x32x32xbf16>
    %207 = vector.shape_cast %206 : vector<1x32x32xbf16> to vector<32x32xbf16>
    %c1_99 = arith.constant 1 : index
    %c0_100 = arith.constant 0 : index
    %c0_101 = arith.constant 0 : index
    %208 = vector.load %arg14[%c1_99, %c0_100, %c0_101] : memref<3x1x32xf32, #tpu.memory_space<vmem>>, vector<1x1x32xf32>
    %209 = vector.shape_cast %208 : vector<1x1x32xf32> to vector<1x32xf32>
    %c1_102 = arith.constant 1 : index
    %c0_103 = arith.constant 0 : index
    %c0_104 = arith.constant 0 : index
    %210 = vector.load %arg15[%c1_102, %c0_103, %c0_104] : memref<3x32x32xbf16, #tpu.memory_space<vmem>>, vector<1x32x32xbf16>
    %211 = vector.shape_cast %210 : vector<1x32x32xbf16> to vector<32x32xbf16>
    %c1_105 = arith.constant 1 : index
    %c0_106 = arith.constant 0 : index
    %c0_107 = arith.constant 0 : index
    %212 = vector.load %arg16[%c1_105, %c0_106, %c0_107] : memref<3x1x32xf32, #tpu.memory_space<vmem>>, vector<1x1x32xf32>
    %213 = vector.shape_cast %212 : vector<1x1x32xf32> to vector<1x32xf32>
    %214 = tpu.transpose %205, [0, 2, 1] : vector<8x32x64xf32> -> vector<8x64x32xf32>
    %215 = vector.shape_cast %214 : vector<8x64x32xf32> to vector<512x32xf32>
    %216 = arith.truncf %215 : vector<512x32xf32> to vector<512x32xbf16>
    %cst_108 = arith.constant dense<0.000000e+00> : vector<512x32xf32>
    %217 = tpu.matmul %216, %207, %cst_108 {dimension_numbers = #tpu.dot_dimension_numbers<[1], [0], [0], [1], [0, 0, 1, 1], [], []>} : vector<512x32xbf16>, vector<32x32xbf16>, vector<512x32xf32> -> vector<512x32xf32>
    %218 = vector.broadcast %209 : vector<1x32xf32> to vector<512x32xf32>
    %219 = arith.addf %217, %218 : vector<512x32xf32>
    %cst_109 = arith.constant 5.000000e-01 : f32
    %220 = vector.broadcast %cst_109 : f32 to vector<512x32xf32>
    %221 = arith.mulf %220, %219 : vector<512x32xf32>
    %cst_110 = arith.constant 4.471500e-02 : f32
    %222 = vector.broadcast %cst_110 : f32 to vector<512x32xf32>
    %223 = arith.mulf %222, %219 : vector<512x32xf32>
    %224 = arith.mulf %223, %219 : vector<512x32xf32>
    %225 = arith.mulf %224, %219 : vector<512x32xf32>
    %226 = arith.addf %219, %225 : vector<512x32xf32>
    %cst_111 = arith.constant 0.797884583 : f32
    %227 = vector.broadcast %cst_111 : f32 to vector<512x32xf32>
    %228 = arith.mulf %227, %226 : vector<512x32xf32>
    %229 = math.tanh %228 : vector<512x32xf32>
    %cst_112 = arith.constant 1.000000e+00 : f32
    %230 = vector.broadcast %cst_112 : f32 to vector<512x32xf32>
    %231 = arith.addf %230, %229 : vector<512x32xf32>
    %232 = arith.mulf %221, %231 : vector<512x32xf32>
    %233 = arith.truncf %232 : vector<512x32xf32> to vector<512x32xbf16>
    %cst_113 = arith.constant dense<0.000000e+00> : vector<512x32xf32>
    %234 = tpu.matmul %233, %211, %cst_113 {dimension_numbers = #tpu.dot_dimension_numbers<[1], [0], [0], [1], [0, 0, 1, 1], [], []>} : vector<512x32xbf16>, vector<32x32xbf16>, vector<512x32xf32> -> vector<512x32xf32>
    %235 = vector.broadcast %213 : vector<1x32xf32> to vector<512x32xf32>
    %236 = arith.addf %234, %235 : vector<512x32xf32>
    %237 = vector.shape_cast %236 : vector<512x32xf32> to vector<8x64x32xf32>
    %238 = tpu.transpose %237, [0, 2, 1] : vector<8x64x32xf32> -> vector<8x32x64xf32>
    %239 = arith.addf %177, %238 : vector<8x32x64xf32>
    %c1_114 = arith.constant 1 : index
    %c0_115 = arith.constant 0 : index
    %c0_116 = arith.constant 0 : index
    %240 = vector.load %arg17[%c1_114, %c0_115, %c0_116] : memref<3x1x64xf32, #tpu.memory_space<vmem>>, vector<1x1x64xf32>
    %241 = vector.shape_cast %240 : vector<1x1x64xf32> to vector<1x64xf32>
    %c1_117 = arith.constant 1 : index
    %c0_118 = arith.constant 0 : index
    %c0_119 = arith.constant 0 : index
    %242 = vector.load %arg18[%c1_117, %c0_118, %c0_119] : memref<3x1x64xf32, #tpu.memory_space<vmem>>, vector<1x1x64xf32>
    %243 = vector.shape_cast %242 : vector<1x1x64xf32> to vector<1x64xf32>
    %cst_120 = arith.constant dense<0.000000e+00> : vector<8x32xf32>
    %244 = vector.multi_reduction <add>, %239, %cst_120 [2] : vector<8x32x64xf32> to vector<8x32xf32>
    %245 = vector.shape_cast %244 : vector<8x32xf32> to vector<8x32x1xf32>
    %cst_121 = arith.constant 6.400000e+01 : f32
    %246 = vector.broadcast %cst_121 : f32 to vector<8x32x1xf32>
    %247 = arith.divf %245, %246 : vector<8x32x1xf32>
    %248 = arith.mulf %239, %239 : vector<8x32x64xf32>
    %cst_122 = arith.constant dense<0.000000e+00> : vector<8x32xf32>
    %249 = vector.multi_reduction <add>, %248, %cst_122 [2] : vector<8x32x64xf32> to vector<8x32xf32>
    %250 = vector.shape_cast %249 : vector<8x32xf32> to vector<8x32x1xf32>
    %cst_123 = arith.constant 6.400000e+01 : f32
    %251 = vector.broadcast %cst_123 : f32 to vector<8x32x1xf32>
    %252 = arith.divf %250, %251 : vector<8x32x1xf32>
    %253 = arith.mulf %247, %247 : vector<8x32x1xf32>
    %254 = arith.subf %252, %253 : vector<8x32x1xf32>
    %255 = vector.broadcast %247 : vector<8x32x1xf32> to vector<8x32x64xf32>
    %256 = arith.subf %239, %255 : vector<8x32x64xf32>
    %cst_124 = arith.constant 9.99999974E-6 : f32
    %257 = vector.broadcast %cst_124 : f32 to vector<8x32x1xf32>
    %258 = arith.addf %254, %257 : vector<8x32x1xf32>
    %259 = math.rsqrt %258 : vector<8x32x1xf32>
    %260 = vector.broadcast %259 : vector<8x32x1xf32> to vector<8x32x64xf32>
    %261 = arith.mulf %256, %260 : vector<8x32x64xf32>
    %262 = vector.shape_cast %241 : vector<1x64xf32> to vector<1x1x64xf32>
    %263 = vector.broadcast %262 : vector<1x1x64xf32> to vector<8x32x64xf32>
    %264 = arith.mulf %261, %263 : vector<8x32x64xf32>
    %265 = vector.shape_cast %243 : vector<1x64xf32> to vector<1x1x64xf32>
    %266 = vector.broadcast %265 : vector<1x1x64xf32> to vector<8x32x64xf32>
    %267 = arith.addf %264, %266 : vector<8x32x64xf32>
    %268 = vector.shape_cast %267 : vector<8x32x64xf32> to vector<256x64xf32>
    %c1_125 = arith.constant 1 : index
    %c0_126 = arith.constant 0 : index
    %c0_127 = arith.constant 0 : index
    %269 = vector.load %arg19[%c1_125, %c0_126, %c0_127] : memref<3x64x64xbf16, #tpu.memory_space<vmem>>, vector<1x64x64xbf16>
    %270 = vector.shape_cast %269 : vector<1x64x64xbf16> to vector<64x64xbf16>
    %c1_128 = arith.constant 1 : index
    %c0_129 = arith.constant 0 : index
    %c0_130 = arith.constant 0 : index
    %271 = vector.load %arg20[%c1_128, %c0_129, %c0_130] : memref<3x1x64xf32, #tpu.memory_space<vmem>>, vector<1x1x64xf32>
    %272 = vector.shape_cast %271 : vector<1x1x64xf32> to vector<1x64xf32>
    %c1_131 = arith.constant 1 : index
    %c0_132 = arith.constant 0 : index
    %c0_133 = arith.constant 0 : index
    %273 = vector.load %arg21[%c1_131, %c0_132, %c0_133] : memref<3x64x64xbf16, #tpu.memory_space<vmem>>, vector<1x64x64xbf16>
    %274 = vector.shape_cast %273 : vector<1x64x64xbf16> to vector<64x64xbf16>
    %c1_134 = arith.constant 1 : index
    %c0_135 = arith.constant 0 : index
    %c0_136 = arith.constant 0 : index
    %275 = vector.load %arg22[%c1_134, %c0_135, %c0_136] : memref<3x1x64xf32, #tpu.memory_space<vmem>>, vector<1x1x64xf32>
    %276 = vector.shape_cast %275 : vector<1x1x64xf32> to vector<1x64xf32>
    %277 = arith.truncf %268 : vector<256x64xf32> to vector<256x64xbf16>
    %cst_137 = arith.constant dense<0.000000e+00> : vector<256x64xf32>
    %278 = tpu.matmul %277, %270, %cst_137 {dimension_numbers = #tpu.dot_dimension_numbers<[1], [0], [0], [1], [0, 0, 1, 1], [], []>} : vector<256x64xbf16>, vector<64x64xbf16>, vector<256x64xf32> -> vector<256x64xf32>
    %279 = vector.broadcast %272 : vector<1x64xf32> to vector<256x64xf32>
    %280 = arith.addf %278, %279 : vector<256x64xf32>
    %cst_138 = arith.constant 5.000000e-01 : f32
    %281 = vector.broadcast %cst_138 : f32 to vector<256x64xf32>
    %282 = arith.mulf %281, %280 : vector<256x64xf32>
    %cst_139 = arith.constant 4.471500e-02 : f32
    %283 = vector.broadcast %cst_139 : f32 to vector<256x64xf32>
    %284 = arith.mulf %283, %280 : vector<256x64xf32>
    %285 = arith.mulf %284, %280 : vector<256x64xf32>
    %286 = arith.mulf %285, %280 : vector<256x64xf32>
    %287 = arith.addf %280, %286 : vector<256x64xf32>
    %cst_140 = arith.constant 0.797884583 : f32
    %288 = vector.broadcast %cst_140 : f32 to vector<256x64xf32>
    %289 = arith.mulf %288, %287 : vector<256x64xf32>
    %290 = math.tanh %289 : vector<256x64xf32>
    %cst_141 = arith.constant 1.000000e+00 : f32
    %291 = vector.broadcast %cst_141 : f32 to vector<256x64xf32>
    %292 = arith.addf %291, %290 : vector<256x64xf32>
    %293 = arith.mulf %282, %292 : vector<256x64xf32>
    %294 = arith.truncf %293 : vector<256x64xf32> to vector<256x64xbf16>
    %cst_142 = arith.constant dense<0.000000e+00> : vector<256x64xf32>
    %295 = tpu.matmul %294, %274, %cst_142 {dimension_numbers = #tpu.dot_dimension_numbers<[1], [0], [0], [1], [0, 0, 1, 1], [], []>} : vector<256x64xbf16>, vector<64x64xbf16>, vector<256x64xf32> -> vector<256x64xf32>
    %296 = vector.broadcast %276 : vector<1x64xf32> to vector<256x64xf32>
    %297 = arith.addf %295, %296 : vector<256x64xf32>
    %298 = vector.shape_cast %297 : vector<256x64xf32> to vector<8x32x64xf32>
    %299 = arith.addf %239, %298 : vector<8x32x64xf32>
    %c2 = arith.constant 2 : index
    %c0_143 = arith.constant 0 : index
    %c0_144 = arith.constant 0 : index
    %300 = vector.load %arg11[%c2, %c0_143, %c0_144] : memref<3x1x64xf32, #tpu.memory_space<vmem>>, vector<1x1x64xf32>
    %301 = vector.shape_cast %300 : vector<1x1x64xf32> to vector<1x64xf32>
    %c2_145 = arith.constant 2 : index
    %c0_146 = arith.constant 0 : index
    %c0_147 = arith.constant 0 : index
    %302 = vector.load %arg12[%c2_145, %c0_146, %c0_147] : memref<3x1x64xf32, #tpu.memory_space<vmem>>, vector<1x1x64xf32>
    %303 = vector.shape_cast %302 : vector<1x1x64xf32> to vector<1x64xf32>
    %cst_148 = arith.constant dense<0.000000e+00> : vector<8x32xf32>
    %304 = vector.multi_reduction <add>, %299, %cst_148 [2] : vector<8x32x64xf32> to vector<8x32xf32>
    %305 = vector.shape_cast %304 : vector<8x32xf32> to vector<8x32x1xf32>
    %cst_149 = arith.constant 6.400000e+01 : f32
    %306 = vector.broadcast %cst_149 : f32 to vector<8x32x1xf32>
    %307 = arith.divf %305, %306 : vector<8x32x1xf32>
    %308 = arith.mulf %299, %299 : vector<8x32x64xf32>
    %cst_150 = arith.constant dense<0.000000e+00> : vector<8x32xf32>
    %309 = vector.multi_reduction <add>, %308, %cst_150 [2] : vector<8x32x64xf32> to vector<8x32xf32>
    %310 = vector.shape_cast %309 : vector<8x32xf32> to vector<8x32x1xf32>
    %cst_151 = arith.constant 6.400000e+01 : f32
    %311 = vector.broadcast %cst_151 : f32 to vector<8x32x1xf32>
    %312 = arith.divf %310, %311 : vector<8x32x1xf32>
    %313 = arith.mulf %307, %307 : vector<8x32x1xf32>
    %314 = arith.subf %312, %313 : vector<8x32x1xf32>
    %315 = vector.broadcast %307 : vector<8x32x1xf32> to vector<8x32x64xf32>
    %316 = arith.subf %299, %315 : vector<8x32x64xf32>
    %cst_152 = arith.constant 9.99999974E-6 : f32
    %317 = vector.broadcast %cst_152 : f32 to vector<8x32x1xf32>
    %318 = arith.addf %314, %317 : vector<8x32x1xf32>
    %319 = math.rsqrt %318 : vector<8x32x1xf32>
    %320 = vector.broadcast %319 : vector<8x32x1xf32> to vector<8x32x64xf32>
    %321 = arith.mulf %316, %320 : vector<8x32x64xf32>
    %322 = vector.shape_cast %301 : vector<1x64xf32> to vector<1x1x64xf32>
    %323 = vector.broadcast %322 : vector<1x1x64xf32> to vector<8x32x64xf32>
    %324 = arith.mulf %321, %323 : vector<8x32x64xf32>
    %325 = vector.shape_cast %303 : vector<1x64xf32> to vector<1x1x64xf32>
    %326 = vector.broadcast %325 : vector<1x1x64xf32> to vector<8x32x64xf32>
    %327 = arith.addf %324, %326 : vector<8x32x64xf32>
    %c2_153 = arith.constant 2 : index
    %c0_154 = arith.constant 0 : index
    %c0_155 = arith.constant 0 : index
    %328 = vector.load %arg13[%c2_153, %c0_154, %c0_155] : memref<3x32x32xbf16, #tpu.memory_space<vmem>>, vector<1x32x32xbf16>
    %329 = vector.shape_cast %328 : vector<1x32x32xbf16> to vector<32x32xbf16>
    %c2_156 = arith.constant 2 : index
    %c0_157 = arith.constant 0 : index
    %c0_158 = arith.constant 0 : index
    %330 = vector.load %arg14[%c2_156, %c0_157, %c0_158] : memref<3x1x32xf32, #tpu.memory_space<vmem>>, vector<1x1x32xf32>
    %331 = vector.shape_cast %330 : vector<1x1x32xf32> to vector<1x32xf32>
    %c2_159 = arith.constant 2 : index
    %c0_160 = arith.constant 0 : index
    %c0_161 = arith.constant 0 : index
    %332 = vector.load %arg15[%c2_159, %c0_160, %c0_161] : memref<3x32x32xbf16, #tpu.memory_space<vmem>>, vector<1x32x32xbf16>
    %333 = vector.shape_cast %332 : vector<1x32x32xbf16> to vector<32x32xbf16>
    %c2_162 = arith.constant 2 : index
    %c0_163 = arith.constant 0 : index
    %c0_164 = arith.constant 0 : index
    %334 = vector.load %arg16[%c2_162, %c0_163, %c0_164] : memref<3x1x32xf32, #tpu.memory_space<vmem>>, vector<1x1x32xf32>
    %335 = vector.shape_cast %334 : vector<1x1x32xf32> to vector<1x32xf32>
    %336 = tpu.transpose %327, [0, 2, 1] : vector<8x32x64xf32> -> vector<8x64x32xf32>
    %337 = vector.shape_cast %336 : vector<8x64x32xf32> to vector<512x32xf32>
    %338 = arith.truncf %337 : vector<512x32xf32> to vector<512x32xbf16>
    %cst_165 = arith.constant dense<0.000000e+00> : vector<512x32xf32>
    %339 = tpu.matmul %338, %329, %cst_165 {dimension_numbers = #tpu.dot_dimension_numbers<[1], [0], [0], [1], [0, 0, 1, 1], [], []>} : vector<512x32xbf16>, vector<32x32xbf16>, vector<512x32xf32> -> vector<512x32xf32>
    %340 = vector.broadcast %331 : vector<1x32xf32> to vector<512x32xf32>
    %341 = arith.addf %339, %340 : vector<512x32xf32>
    %cst_166 = arith.constant 5.000000e-01 : f32
    %342 = vector.broadcast %cst_166 : f32 to vector<512x32xf32>
    %343 = arith.mulf %342, %341 : vector<512x32xf32>
    %cst_167 = arith.constant 4.471500e-02 : f32
    %344 = vector.broadcast %cst_167 : f32 to vector<512x32xf32>
    %345 = arith.mulf %344, %341 : vector<512x32xf32>
    %346 = arith.mulf %345, %341 : vector<512x32xf32>
    %347 = arith.mulf %346, %341 : vector<512x32xf32>
    %348 = arith.addf %341, %347 : vector<512x32xf32>
    %cst_168 = arith.constant 0.797884583 : f32
    %349 = vector.broadcast %cst_168 : f32 to vector<512x32xf32>
    %350 = arith.mulf %349, %348 : vector<512x32xf32>
    %351 = math.tanh %350 : vector<512x32xf32>
    %cst_169 = arith.constant 1.000000e+00 : f32
    %352 = vector.broadcast %cst_169 : f32 to vector<512x32xf32>
    %353 = arith.addf %352, %351 : vector<512x32xf32>
    %354 = arith.mulf %343, %353 : vector<512x32xf32>
    %355 = arith.truncf %354 : vector<512x32xf32> to vector<512x32xbf16>
    %cst_170 = arith.constant dense<0.000000e+00> : vector<512x32xf32>
    %356 = tpu.matmul %355, %333, %cst_170 {dimension_numbers = #tpu.dot_dimension_numbers<[1], [0], [0], [1], [0, 0, 1, 1], [], []>} : vector<512x32xbf16>, vector<32x32xbf16>, vector<512x32xf32> -> vector<512x32xf32>
    %357 = vector.broadcast %335 : vector<1x32xf32> to vector<512x32xf32>
    %358 = arith.addf %356, %357 : vector<512x32xf32>
    %359 = vector.shape_cast %358 : vector<512x32xf32> to vector<8x64x32xf32>
    %360 = tpu.transpose %359, [0, 2, 1] : vector<8x64x32xf32> -> vector<8x32x64xf32>
    %361 = arith.addf %299, %360 : vector<8x32x64xf32>
    %c2_171 = arith.constant 2 : index
    %c0_172 = arith.constant 0 : index
    %c0_173 = arith.constant 0 : index
    %362 = vector.load %arg17[%c2_171, %c0_172, %c0_173] : memref<3x1x64xf32, #tpu.memory_space<vmem>>, vector<1x1x64xf32>
    %363 = vector.shape_cast %362 : vector<1x1x64xf32> to vector<1x64xf32>
    %c2_174 = arith.constant 2 : index
    %c0_175 = arith.constant 0 : index
    %c0_176 = arith.constant 0 : index
    %364 = vector.load %arg18[%c2_174, %c0_175, %c0_176] : memref<3x1x64xf32, #tpu.memory_space<vmem>>, vector<1x1x64xf32>
    %365 = vector.shape_cast %364 : vector<1x1x64xf32> to vector<1x64xf32>
    %cst_177 = arith.constant dense<0.000000e+00> : vector<8x32xf32>
    %366 = vector.multi_reduction <add>, %361, %cst_177 [2] : vector<8x32x64xf32> to vector<8x32xf32>
    %367 = vector.shape_cast %366 : vector<8x32xf32> to vector<8x32x1xf32>
    %cst_178 = arith.constant 6.400000e+01 : f32
    %368 = vector.broadcast %cst_178 : f32 to vector<8x32x1xf32>
    %369 = arith.divf %367, %368 : vector<8x32x1xf32>
    %370 = arith.mulf %361, %361 : vector<8x32x64xf32>
    %cst_179 = arith.constant dense<0.000000e+00> : vector<8x32xf32>
    %371 = vector.multi_reduction <add>, %370, %cst_179 [2] : vector<8x32x64xf32> to vector<8x32xf32>
    %372 = vector.shape_cast %371 : vector<8x32xf32> to vector<8x32x1xf32>
    %cst_180 = arith.constant 6.400000e+01 : f32
    %373 = vector.broadcast %cst_180 : f32 to vector<8x32x1xf32>
    %374 = arith.divf %372, %373 : vector<8x32x1xf32>
    %375 = arith.mulf %369, %369 : vector<8x32x1xf32>
    %376 = arith.subf %374, %375 : vector<8x32x1xf32>
    %377 = vector.broadcast %369 : vector<8x32x1xf32> to vector<8x32x64xf32>
    %378 = arith.subf %361, %377 : vector<8x32x64xf32>
    %cst_181 = arith.constant 9.99999974E-6 : f32
    %379 = vector.broadcast %cst_181 : f32 to vector<8x32x1xf32>
    %380 = arith.addf %376, %379 : vector<8x32x1xf32>
    %381 = math.rsqrt %380 : vector<8x32x1xf32>
    %382 = vector.broadcast %381 : vector<8x32x1xf32> to vector<8x32x64xf32>
    %383 = arith.mulf %378, %382 : vector<8x32x64xf32>
    %384 = vector.shape_cast %363 : vector<1x64xf32> to vector<1x1x64xf32>
    %385 = vector.broadcast %384 : vector<1x1x64xf32> to vector<8x32x64xf32>
    %386 = arith.mulf %383, %385 : vector<8x32x64xf32>
    %387 = vector.shape_cast %365 : vector<1x64xf32> to vector<1x1x64xf32>
    %388 = vector.broadcast %387 : vector<1x1x64xf32> to vector<8x32x64xf32>
    %389 = arith.addf %386, %388 : vector<8x32x64xf32>
    %390 = vector.shape_cast %389 : vector<8x32x64xf32> to vector<256x64xf32>
    %c2_182 = arith.constant 2 : index
    %c0_183 = arith.constant 0 : index
    %c0_184 = arith.constant 0 : index
    %391 = vector.load %arg19[%c2_182, %c0_183, %c0_184] : memref<3x64x64xbf16, #tpu.memory_space<vmem>>, vector<1x64x64xbf16>
    %392 = vector.shape_cast %391 : vector<1x64x64xbf16> to vector<64x64xbf16>
    %c2_185 = arith.constant 2 : index
    %c0_186 = arith.constant 0 : index
    %c0_187 = arith.constant 0 : index
    %393 = vector.load %arg20[%c2_185, %c0_186, %c0_187] : memref<3x1x64xf32, #tpu.memory_space<vmem>>, vector<1x1x64xf32>
    %394 = vector.shape_cast %393 : vector<1x1x64xf32> to vector<1x64xf32>
    %c2_188 = arith.constant 2 : index
    %c0_189 = arith.constant 0 : index
    %c0_190 = arith.constant 0 : index
    %395 = vector.load %arg21[%c2_188, %c0_189, %c0_190] : memref<3x64x64xbf16, #tpu.memory_space<vmem>>, vector<1x64x64xbf16>
    %396 = vector.shape_cast %395 : vector<1x64x64xbf16> to vector<64x64xbf16>
    %c2_191 = arith.constant 2 : index
    %c0_192 = arith.constant 0 : index
    %c0_193 = arith.constant 0 : index
    %397 = vector.load %arg22[%c2_191, %c0_192, %c0_193] : memref<3x1x64xf32, #tpu.memory_space<vmem>>, vector<1x1x64xf32>
    %398 = vector.shape_cast %397 : vector<1x1x64xf32> to vector<1x64xf32>
    %399 = arith.truncf %390 : vector<256x64xf32> to vector<256x64xbf16>
    %cst_194 = arith.constant dense<0.000000e+00> : vector<256x64xf32>
    %400 = tpu.matmul %399, %392, %cst_194 {dimension_numbers = #tpu.dot_dimension_numbers<[1], [0], [0], [1], [0, 0, 1, 1], [], []>} : vector<256x64xbf16>, vector<64x64xbf16>, vector<256x64xf32> -> vector<256x64xf32>
    %401 = vector.broadcast %394 : vector<1x64xf32> to vector<256x64xf32>
    %402 = arith.addf %400, %401 : vector<256x64xf32>
    %cst_195 = arith.constant 5.000000e-01 : f32
    %403 = vector.broadcast %cst_195 : f32 to vector<256x64xf32>
    %404 = arith.mulf %403, %402 : vector<256x64xf32>
    %cst_196 = arith.constant 4.471500e-02 : f32
    %405 = vector.broadcast %cst_196 : f32 to vector<256x64xf32>
    %406 = arith.mulf %405, %402 : vector<256x64xf32>
    %407 = arith.mulf %406, %402 : vector<256x64xf32>
    %408 = arith.mulf %407, %402 : vector<256x64xf32>
    %409 = arith.addf %402, %408 : vector<256x64xf32>
    %cst_197 = arith.constant 0.797884583 : f32
    %410 = vector.broadcast %cst_197 : f32 to vector<256x64xf32>
    %411 = arith.mulf %410, %409 : vector<256x64xf32>
    %412 = math.tanh %411 : vector<256x64xf32>
    %cst_198 = arith.constant 1.000000e+00 : f32
    %413 = vector.broadcast %cst_198 : f32 to vector<256x64xf32>
    %414 = arith.addf %413, %412 : vector<256x64xf32>
    %415 = arith.mulf %404, %414 : vector<256x64xf32>
    %416 = arith.truncf %415 : vector<256x64xf32> to vector<256x64xbf16>
    %cst_199 = arith.constant dense<0.000000e+00> : vector<256x64xf32>
    %417 = tpu.matmul %416, %396, %cst_199 {dimension_numbers = #tpu.dot_dimension_numbers<[1], [0], [0], [1], [0, 0, 1, 1], [], []>} : vector<256x64xbf16>, vector<64x64xbf16>, vector<256x64xf32> -> vector<256x64xf32>
    %418 = vector.broadcast %398 : vector<1x64xf32> to vector<256x64xf32>
    %419 = arith.addf %417, %418 : vector<256x64xf32>
    %420 = vector.shape_cast %419 : vector<256x64xf32> to vector<8x32x64xf32>
    %421 = arith.addf %361, %420 : vector<8x32x64xf32>
    %cst_200 = arith.constant dense<0.000000e+00> : vector<8x64xf32>
    %422 = vector.multi_reduction <add>, %421, %cst_200 [1] : vector<8x32x64xf32> to vector<8x64xf32>
    %cst_201 = arith.constant 3.200000e+01 : f32
    %423 = vector.broadcast %cst_201 : f32 to vector<8x64xf32>
    %424 = arith.divf %422, %423 : vector<8x64xf32>
    %c0_202 = arith.constant 0 : index
    %c0_203 = arith.constant 0 : index
    %425 = vector.load %arg2[%c0_202, %c0_203] : memref<8x64xf32, #tpu.memory_space<vmem>>, vector<8x64xf32>
    %426 = arith.addf %424, %425 : vector<8x64xf32>
    %c0_204 = arith.constant 0 : index
    %c0_205 = arith.constant 0 : index
    %427 = vector.load %arg23[%c0_204, %c0_205] : memref<1x64xf32, #tpu.memory_space<vmem>>, vector<1x64xf32>
    %c0_206 = arith.constant 0 : index
    %c0_207 = arith.constant 0 : index
    %428 = vector.load %arg24[%c0_206, %c0_207] : memref<1x64xf32, #tpu.memory_space<vmem>>, vector<1x64xf32>
    %cst_208 = arith.constant dense<0.000000e+00> : vector<8xf32>
    %429 = vector.multi_reduction <add>, %426, %cst_208 [1] : vector<8x64xf32> to vector<8xf32>
    %430 = vector.shape_cast %429 : vector<8xf32> to vector<8x1xf32>
    %cst_209 = arith.constant 6.400000e+01 : f32
    %431 = vector.broadcast %cst_209 : f32 to vector<8x1xf32>
    %432 = arith.divf %430, %431 : vector<8x1xf32>
    %433 = arith.mulf %426, %426 : vector<8x64xf32>
    %cst_210 = arith.constant dense<0.000000e+00> : vector<8xf32>
    %434 = vector.multi_reduction <add>, %433, %cst_210 [1] : vector<8x64xf32> to vector<8xf32>
    %435 = vector.shape_cast %434 : vector<8xf32> to vector<8x1xf32>
    %cst_211 = arith.constant 6.400000e+01 : f32
    %436 = vector.broadcast %cst_211 : f32 to vector<8x1xf32>
    %437 = arith.divf %435, %436 : vector<8x1xf32>
    %438 = arith.mulf %432, %432 : vector<8x1xf32>
    %439 = arith.subf %437, %438 : vector<8x1xf32>
    %440 = vector.broadcast %432 : vector<8x1xf32> to vector<8x64xf32>
    %441 = arith.subf %426, %440 : vector<8x64xf32>
    %cst_212 = arith.constant 9.99999974E-6 : f32
    %442 = vector.broadcast %cst_212 : f32 to vector<8x1xf32>
    %443 = arith.addf %439, %442 : vector<8x1xf32>
    %444 = math.rsqrt %443 : vector<8x1xf32>
    %445 = vector.broadcast %444 : vector<8x1xf32> to vector<8x64xf32>
    %446 = arith.mulf %441, %445 : vector<8x64xf32>
    %447 = vector.broadcast %427 : vector<1x64xf32> to vector<8x64xf32>
    %448 = arith.mulf %446, %447 : vector<8x64xf32>
    %449 = vector.broadcast %428 : vector<1x64xf32> to vector<8x64xf32>
    %450 = arith.addf %448, %449 : vector<8x64xf32>
    %c0_213 = arith.constant 0 : index
    %c0_214 = arith.constant 0 : index
    %451 = vector.load %arg25[%c0_213, %c0_214] : memref<64x32xbf16, #tpu.memory_space<vmem>>, vector<64x32xbf16>
    %c0_215 = arith.constant 0 : index
    %c0_216 = arith.constant 0 : index
    %452 = vector.load %arg26[%c0_215, %c0_216] : memref<1x32xf32, #tpu.memory_space<vmem>>, vector<1x32xf32>
    %c0_217 = arith.constant 0 : index
    %c0_218 = arith.constant 0 : index
    %453 = vector.load %arg27[%c0_217, %c0_218] : memref<32x32xbf16, #tpu.memory_space<vmem>>, vector<32x32xbf16>
    %c0_219 = arith.constant 0 : index
    %c0_220 = arith.constant 0 : index
    %454 = vector.load %arg28[%c0_219, %c0_220] : memref<1x32xf32, #tpu.memory_space<vmem>>, vector<1x32xf32>
    %455 = arith.truncf %450 : vector<8x64xf32> to vector<8x64xbf16>
    %cst_221 = arith.constant dense<0.000000e+00> : vector<8x32xf32>
    %456 = tpu.matmul %455, %451, %cst_221 {dimension_numbers = #tpu.dot_dimension_numbers<[1], [0], [0], [1], [0, 0, 1, 1], [], []>} : vector<8x64xbf16>, vector<64x32xbf16>, vector<8x32xf32> -> vector<8x32xf32>
    %457 = vector.broadcast %452 : vector<1x32xf32> to vector<8x32xf32>
    %458 = arith.addf %456, %457 : vector<8x32xf32>
    %cst_222 = arith.constant 5.000000e-01 : f32
    %459 = vector.broadcast %cst_222 : f32 to vector<8x32xf32>
    %460 = arith.mulf %459, %458 : vector<8x32xf32>
    %cst_223 = arith.constant 4.471500e-02 : f32
    %461 = vector.broadcast %cst_223 : f32 to vector<8x32xf32>
    %462 = arith.mulf %461, %458 : vector<8x32xf32>
    %463 = arith.mulf %462, %458 : vector<8x32xf32>
    %464 = arith.mulf %463, %458 : vector<8x32xf32>
    %465 = arith.addf %458, %464 : vector<8x32xf32>
    %cst_224 = arith.constant 0.797884583 : f32
    %466 = vector.broadcast %cst_224 : f32 to vector<8x32xf32>
    %467 = arith.mulf %466, %465 : vector<8x32xf32>
    %468 = math.tanh %467 : vector<8x32xf32>
    %cst_225 = arith.constant 1.000000e+00 : f32
    %469 = vector.broadcast %cst_225 : f32 to vector<8x32xf32>
    %470 = arith.addf %469, %468 : vector<8x32xf32>
    %471 = arith.mulf %460, %470 : vector<8x32xf32>
    %472 = arith.truncf %471 : vector<8x32xf32> to vector<8x32xbf16>
    %cst_226 = arith.constant dense<0.000000e+00> : vector<8x32xf32>
    %473 = tpu.matmul %472, %453, %cst_226 {dimension_numbers = #tpu.dot_dimension_numbers<[1], [0], [0], [1], [0, 0, 1, 1], [], []>} : vector<8x32xbf16>, vector<32x32xbf16>, vector<8x32xf32> -> vector<8x32xf32>
    %474 = vector.broadcast %454 : vector<1x32xf32> to vector<8x32xf32>
    %475 = arith.addf %473, %474 : vector<8x32xf32>
    %c0_227 = arith.constant 0 : index
    %c0_228 = arith.constant 0 : index
    %476 = vector.load %arg29[%c0_227, %c0_228] : memref<8x32xf32, #tpu.memory_space<vmem>>, vector<8x32xf32>
    tpu.vector_store %arg29[%c0_227, %c0_228], %475 {strides = array<i32>} : memref<8x32xf32, #tpu.memory_space<vmem>>, vector<8x32xf32>,
    return
  }
  func.func @transform_0(%arg0: i32) -> (i32, i32) {
    %c0_i32 = arith.constant 0 : i32
    %c0_i32_0 = arith.constant 0 : i32
    return %c0_i32, %arg0 : i32, i32
  }
  func.func @transform_1(%arg0: i32) -> (i32, i32) {
    %c0_i32 = arith.constant 0 : i32
    %c0_i32_0 = arith.constant 0 : i32
    return %arg0, %c0_i32 : i32, i32
  }
  func.func @transform_2(%arg0: i32) -> (i32, i32) {
    %c0_i32 = arith.constant 0 : i32
    %c0_i32_0 = arith.constant 0 : i32
    %c0_i32_1 = arith.constant 0 : i32
    return %c0_i32, %c0_i32_0 : i32, i32
  }
  func.func @transform_3(%arg0: i32) -> (i32, i32) {
    %c0_i32 = arith.constant 0 : i32
    %c0_i32_0 = arith.constant 0 : i32
    %c0_i32_1 = arith.constant 0 : i32
    return %c0_i32, %c0_i32_0 : i32, i32
  }
  func.func @transform_4(%arg0: i32) -> (i32, i32) {
    %c0_i32 = arith.constant 0 : i32
    %c0_i32_0 = arith.constant 0 : i32
    %c0_i32_1 = arith.constant 0 : i32
    return %c0_i32, %c0_i32_0 : i32, i32
  }
  func.func @transform_5(%arg0: i32) -> (i32, i32) {
    %c0_i32 = arith.constant 0 : i32
    %c0_i32_0 = arith.constant 0 : i32
    %c0_i32_1 = arith.constant 0 : i32
    return %c0_i32, %c0_i32_0 : i32, i32
  }
  func.func @transform_6(%arg0: i32) -> (i32, i32) {
    %c0_i32 = arith.constant 0 : i32
    %c0_i32_0 = arith.constant 0 : i32
    %c0_i32_1 = arith.constant 0 : i32
    return %c0_i32, %c0_i32_0 : i32, i32
  }
  func.func @transform_7(%arg0: i32) -> (i32, i32) {
    %c0_i32 = arith.constant 0 : i32
    %c0_i32_0 = arith.constant 0 : i32
    %c0_i32_1 = arith.constant 0 : i32
    return %c0_i32, %c0_i32_0 : i32, i32
  }
  func.func @transform_8(%arg0: i32) -> (i32, i32) {
    %c0_i32 = arith.constant 0 : i32
    %c0_i32_0 = arith.constant 0 : i32
    %c0_i32_1 = arith.constant 0 : i32
    return %c0_i32, %c0_i32_0 : i32, i32
  }
  func.func @transform_9(%arg0: i32) -> (i32, i32) {
    %c0_i32 = arith.constant 0 : i32
    %c0_i32_0 = arith.constant 0 : i32
    %c0_i32_1 = arith.constant 0 : i32
    return %c0_i32, %c0_i32_0 : i32, i32
  }
  func.func @transform_10(%arg0: i32) -> (i32, i32, i32) {
    %c0_i32 = arith.constant 0 : i32
    %c0_i32_0 = arith.constant 0 : i32
    %c0_i32_1 = arith.constant 0 : i32
    %c0_i32_2 = arith.constant 0 : i32
    return %c0_i32, %c0_i32_0, %c0_i32_1 : i32, i32, i32
  }
  func.func @transform_11(%arg0: i32) -> (i32, i32, i32) {
    %c0_i32 = arith.constant 0 : i32
    %c0_i32_0 = arith.constant 0 : i32
    %c0_i32_1 = arith.constant 0 : i32
    %c0_i32_2 = arith.constant 0 : i32
    return %c0_i32, %c0_i32_0, %c0_i32_1 : i32, i32, i32
  }
  func.func @transform_12(%arg0: i32) -> (i32, i32, i32) {
    %c0_i32 = arith.constant 0 : i32
    %c0_i32_0 = arith.constant 0 : i32
    %c0_i32_1 = arith.constant 0 : i32
    %c0_i32_2 = arith.constant 0 : i32
    return %c0_i32, %c0_i32_0, %c0_i32_1 : i32, i32, i32
  }
  func.func @transform_13(%arg0: i32) -> (i32, i32, i32) {
    %c0_i32 = arith.constant 0 : i32
    %c0_i32_0 = arith.constant 0 : i32
    %c0_i32_1 = arith.constant 0 : i32
    %c0_i32_2 = arith.constant 0 : i32
    return %c0_i32, %c0_i32_0, %c0_i32_1 : i32, i32, i32
  }
  func.func @transform_14(%arg0: i32) -> (i32, i32, i32) {
    %c0_i32 = arith.constant 0 : i32
    %c0_i32_0 = arith.constant 0 : i32
    %c0_i32_1 = arith.constant 0 : i32
    %c0_i32_2 = arith.constant 0 : i32
    return %c0_i32, %c0_i32_0, %c0_i32_1 : i32, i32, i32
  }
  func.func @transform_15(%arg0: i32) -> (i32, i32, i32) {
    %c0_i32 = arith.constant 0 : i32
    %c0_i32_0 = arith.constant 0 : i32
    %c0_i32_1 = arith.constant 0 : i32
    %c0_i32_2 = arith.constant 0 : i32
    return %c0_i32, %c0_i32_0, %c0_i32_1 : i32, i32, i32
  }
  func.func @transform_16(%arg0: i32) -> (i32, i32, i32) {
    %c0_i32 = arith.constant 0 : i32
    %c0_i32_0 = arith.constant 0 : i32
    %c0_i32_1 = arith.constant 0 : i32
    %c0_i32_2 = arith.constant 0 : i32
    return %c0_i32, %c0_i32_0, %c0_i32_1 : i32, i32, i32
  }
  func.func @transform_17(%arg0: i32) -> (i32, i32, i32) {
    %c0_i32 = arith.constant 0 : i32
    %c0_i32_0 = arith.constant 0 : i32
    %c0_i32_1 = arith.constant 0 : i32
    %c0_i32_2 = arith.constant 0 : i32
    return %c0_i32, %c0_i32_0, %c0_i32_1 : i32, i32, i32
  }
  func.func @transform_18(%arg0: i32) -> (i32, i32, i32) {
    %c0_i32 = arith.constant 0 : i32
    %c0_i32_0 = arith.constant 0 : i32
    %c0_i32_1 = arith.constant 0 : i32
    %c0_i32_2 = arith.constant 0 : i32
    return %c0_i32, %c0_i32_0, %c0_i32_1 : i32, i32, i32
  }
  func.func @transform_19(%arg0: i32) -> (i32, i32, i32) {
    %c0_i32 = arith.constant 0 : i32
    %c0_i32_0 = arith.constant 0 : i32
    %c0_i32_1 = arith.constant 0 : i32
    %c0_i32_2 = arith.constant 0 : i32
    return %c0_i32, %c0_i32_0, %c0_i32_1 : i32, i32, i32
  }
  func.func @transform_20(%arg0: i32) -> (i32, i32, i32) {
    %c0_i32 = arith.constant 0 : i32
    %c0_i32_0 = arith.constant 0 : i32
    %c0_i32_1 = arith.constant 0 : i32
    %c0_i32_2 = arith.constant 0 : i32
    return %c0_i32, %c0_i32_0, %c0_i32_1 : i32, i32, i32
  }
  func.func @transform_21(%arg0: i32) -> (i32, i32, i32) {
    %c0_i32 = arith.constant 0 : i32
    %c0_i32_0 = arith.constant 0 : i32
    %c0_i32_1 = arith.constant 0 : i32
    %c0_i32_2 = arith.constant 0 : i32
    return %c0_i32, %c0_i32_0, %c0_i32_1 : i32, i32, i32
  }
  func.func @transform_22(%arg0: i32) -> (i32, i32) {
    %c0_i32 = arith.constant 0 : i32
    %c0_i32_0 = arith.constant 0 : i32
    %c0_i32_1 = arith.constant 0 : i32
    return %c0_i32, %c0_i32_0 : i32, i32
  }
  func.func @transform_23(%arg0: i32) -> (i32, i32) {
    %c0_i32 = arith.constant 0 : i32
    %c0_i32_0 = arith.constant 0 : i32
    %c0_i32_1 = arith.constant 0 : i32
    return %c0_i32, %c0_i32_0 : i32, i32
  }
  func.func @transform_24(%arg0: i32) -> (i32, i32) {
    %c0_i32 = arith.constant 0 : i32
    %c0_i32_0 = arith.constant 0 : i32
    %c0_i32_1 = arith.constant 0 : i32
    return %c0_i32, %c0_i32_0 : i32, i32
  }
  func.func @transform_25(%arg0: i32) -> (i32, i32) {
    %c0_i32 = arith.constant 0 : i32
    %c0_i32_0 = arith.constant 0 : i32
    %c0_i32_1 = arith.constant 0 : i32
    return %c0_i32, %c0_i32_0 : i32, i32
  }
  func.func @transform_26(%arg0: i32) -> (i32, i32) {
    %c0_i32 = arith.constant 0 : i32
    %c0_i32_0 = arith.constant 0 : i32
    %c0_i32_1 = arith.constant 0 : i32
    return %c0_i32, %c0_i32_0 : i32, i32
  }
  func.func @transform_27(%arg0: i32) -> (i32, i32) {
    %c0_i32 = arith.constant 0 : i32
    %c0_i32_0 = arith.constant 0 : i32
    %c0_i32_1 = arith.constant 0 : i32
    return %c0_i32, %c0_i32_0 : i32, i32
  }
  func.func @transform_28(%arg0: i32) -> (i32, i32) {
    %c0_i32 = arith.constant 0 : i32
    %c0_i32_0 = arith.constant 0 : i32
    return %arg0, %c0_i32 : i32, i32
  }
}

module attributes {stable_mosaic.version = 11 : i64} {
  func.func @_lane_kernel(%arg0: i32, %arg1: memref<8x128xf32, #tpu.memory_space<vmem>>, %arg2: memref<8x64xf32, #tpu.memory_space<vmem>>, %arg3: memref<64x8xf32, #tpu.memory_space<vmem>>, %arg4: memref<1x64xf32, #tpu.memory_space<vmem>>, %arg5: memref<64x64xf32, #tpu.memory_space<vmem>>, %arg6: memref<1x64xf32, #tpu.memory_space<vmem>>, %arg7: memref<32x16xf32, #tpu.memory_space<vmem>>, %arg8: memref<32x1xf32, #tpu.memory_space<vmem>>, %arg9: memref<32x32xf32, #tpu.memory_space<vmem>>, %arg10: memref<32x1xf32, #tpu.memory_space<vmem>>, %arg11: memref<3x1x64xf32, #tpu.memory_space<vmem>>, %arg12: memref<3x1x64xf32, #tpu.memory_space<vmem>>, %arg13: memref<3x32x32xf32, #tpu.memory_space<vmem>>, %arg14: memref<3x32x1xf32, #tpu.memory_space<vmem>>, %arg15: memref<3x32x32xf32, #tpu.memory_space<vmem>>, %arg16: memref<3x32x1xf32, #tpu.memory_space<vmem>>, %arg17: memref<3x1x64xf32, #tpu.memory_space<vmem>>, %arg18: memref<3x1x64xf32, #tpu.memory_space<vmem>>, %arg19: memref<3x64x64xf32, #tpu.memory_space<vmem>>, %arg20: memref<3x1x64xf32, #tpu.memory_space<vmem>>, %arg21: memref<3x64x64xf32, #tpu.memory_space<vmem>>, %arg22: memref<3x1x64xf32, #tpu.memory_space<vmem>>, %arg23: memref<1x64xf32, #tpu.memory_space<vmem>>, %arg24: memref<1x64xf32, #tpu.memory_space<vmem>>, %arg25: memref<64x32xf32, #tpu.memory_space<vmem>>, %arg26: memref<1x32xf32, #tpu.memory_space<vmem>>, %arg27: memref<32x32xf32, #tpu.memory_space<vmem>>, %arg28: memref<1x32xf32, #tpu.memory_space<vmem>>, %arg29: memref<8x32xf32, #tpu.memory_space<vmem>>) attributes {dimension_semantics = [#tpu.dimension_semantics<parallel>], iteration_bounds = array<i64: 2>, scalar_prefetch = 0 : i64, scratch_operands = 0 : i64, tpu.core_type = #tpu.core_type<tc>, window_params = [{transform_indices = @transform_0, window_bounds = array<i64: 8, 128>}, {transform_indices = @transform_1, window_bounds = array<i64: 8, 64>}, {pipeline_mode = #tpu.pipeline_mode<synchronous>, transform_indices = @transform_2, window_bounds = array<i64: 64, 8>}, {pipeline_mode = #tpu.pipeline_mode<synchronous>, transform_indices = @transform_3, window_bounds = array<i64: 1, 64>}, {pipeline_mode = #tpu.pipeline_mode<synchronous>, transform_indices = @transform_4, window_bounds = array<i64: 64, 64>}, {pipeline_mode = #tpu.pipeline_mode<synchronous>, transform_indices = @transform_5, window_bounds = array<i64: 1, 64>}, {pipeline_mode = #tpu.pipeline_mode<synchronous>, transform_indices = @transform_6, window_bounds = array<i64: 32, 16>}, {pipeline_mode = #tpu.pipeline_mode<synchronous>, transform_indices = @transform_7, window_bounds = array<i64: 32, 1>}, {pipeline_mode = #tpu.pipeline_mode<synchronous>, transform_indices = @transform_8, window_bounds = array<i64: 32, 32>}, {pipeline_mode = #tpu.pipeline_mode<synchronous>, transform_indices = @transform_9, window_bounds = array<i64: 32, 1>}, {pipeline_mode = #tpu.pipeline_mode<synchronous>, transform_indices = @transform_10, window_bounds = array<i64: 3, 1, 64>}, {pipeline_mode = #tpu.pipeline_mode<synchronous>, transform_indices = @transform_11, window_bounds = array<i64: 3, 1, 64>}, {pipeline_mode = #tpu.pipeline_mode<synchronous>, transform_indices = @transform_12, window_bounds = array<i64: 3, 32, 32>}, {pipeline_mode = #tpu.pipeline_mode<synchronous>, transform_indices = @transform_13, window_bounds = array<i64: 3, 32, 1>}, {pipeline_mode = #tpu.pipeline_mode<synchronous>, transform_indices = @transform_14, window_bounds = array<i64: 3, 32, 32>}, {pipeline_mode = #tpu.pipeline_mode<synchronous>, transform_indices = @transform_15, window_bounds = array<i64: 3, 32, 1>}, {pipeline_mode = #tpu.pipeline_mode<synchronous>, transform_indices = @transform_16, window_bounds = array<i64: 3, 1, 64>}, {pipeline_mode = #tpu.pipeline_mode<synchronous>, transform_indices = @transform_17, window_bounds = array<i64: 3, 1, 64>}, {pipeline_mode = #tpu.pipeline_mode<synchronous>, transform_indices = @transform_18, window_bounds = array<i64: 3, 64, 64>}, {pipeline_mode = #tpu.pipeline_mode<synchronous>, transform_indices = @transform_19, window_bounds = array<i64: 3, 1, 64>}, {pipeline_mode = #tpu.pipeline_mode<synchronous>, transform_indices = @transform_20, window_bounds = array<i64: 3, 64, 64>}, {pipeline_mode = #tpu.pipeline_mode<synchronous>, transform_indices = @transform_21, window_bounds = array<i64: 3, 1, 64>}, {pipeline_mode = #tpu.pipeline_mode<synchronous>, transform_indices = @transform_22, window_bounds = array<i64: 1, 64>}, {pipeline_mode = #tpu.pipeline_mode<synchronous>, transform_indices = @transform_23, window_bounds = array<i64: 1, 64>}, {pipeline_mode = #tpu.pipeline_mode<synchronous>, transform_indices = @transform_24, window_bounds = array<i64: 64, 32>}, {pipeline_mode = #tpu.pipeline_mode<synchronous>, transform_indices = @transform_25, window_bounds = array<i64: 1, 32>}, {pipeline_mode = #tpu.pipeline_mode<synchronous>, transform_indices = @transform_26, window_bounds = array<i64: 32, 32>}, {pipeline_mode = #tpu.pipeline_mode<synchronous>, transform_indices = @transform_27, window_bounds = array<i64: 1, 32>}, {transform_indices = @transform_28, window_bounds = array<i64: 8, 32>}]} {
    %c0 = arith.constant 0 : index
    %c0_0 = arith.constant 0 : index
    %0 = vector.load %arg3[%c0, %c0_0] : memref<64x8xf32, #tpu.memory_space<vmem>>, vector<64x8xf32>
    %c0_1 = arith.constant 0 : index
    %c0_2 = arith.constant 0 : index
    %1 = vector.load %arg1[%c0_1, %c0_2] : memref<8x128xf32, #tpu.memory_space<vmem>>, vector<8x128xf32>
    %cst = arith.constant dense<0.000000e+00> : vector<64x128xf32>
    %2 = tpu.matmul %0, %1, %cst {dimension_numbers = #tpu.dot_dimension_numbers<[1], [0], [0], [1], [0, 0, 1, 1], [], []>} : vector<64x8xf32>, vector<8x128xf32>, vector<64x128xf32> -> vector<64x128xf32>
    %3 = tpu.transpose %2, [1, 0] : vector<64x128xf32> -> vector<128x64xf32>
    %c0_3 = arith.constant 0 : index
    %c0_4 = arith.constant 0 : index
    %4 = vector.load %arg4[%c0_3, %c0_4] : memref<1x64xf32, #tpu.memory_space<vmem>>, vector<1x64xf32>
    %5 = vector.broadcast %4 : vector<1x64xf32> to vector<128x64xf32>
    %6 = arith.addf %3, %5 : vector<128x64xf32>
    %cst_5 = arith.constant 5.000000e-01 : f32
    %7 = vector.broadcast %cst_5 : f32 to vector<128x64xf32>
    %8 = arith.mulf %7, %6 : vector<128x64xf32>
    %cst_6 = arith.constant 4.471500e-02 : f32
    %9 = vector.broadcast %cst_6 : f32 to vector<128x64xf32>
    %10 = arith.mulf %9, %6 : vector<128x64xf32>
    %11 = arith.mulf %10, %6 : vector<128x64xf32>
    %12 = arith.mulf %11, %6 : vector<128x64xf32>
    %13 = arith.addf %6, %12 : vector<128x64xf32>
    %cst_7 = arith.constant 0.797884583 : f32
    %14 = vector.broadcast %cst_7 : f32 to vector<128x64xf32>
    %15 = arith.mulf %14, %13 : vector<128x64xf32>
    %16 = math.tanh %15 : vector<128x64xf32>
    %cst_8 = arith.constant 1.000000e+00 : f32
    %17 = vector.broadcast %cst_8 : f32 to vector<128x64xf32>
    %18 = arith.addf %17, %16 : vector<128x64xf32>
    %19 = arith.mulf %8, %18 : vector<128x64xf32>
    %c0_9 = arith.constant 0 : index
    %c0_10 = arith.constant 0 : index
    %20 = vector.load %arg5[%c0_9, %c0_10] : memref<64x64xf32, #tpu.memory_space<vmem>>, vector<64x64xf32>
    %cst_11 = arith.constant dense<0.000000e+00> : vector<128x64xf32>
    %21 = tpu.matmul %19, %20, %cst_11 {dimension_numbers = #tpu.dot_dimension_numbers<[1], [0], [0], [1], [0, 0, 1, 1], [], []>} : vector<128x64xf32>, vector<64x64xf32>, vector<128x64xf32> -> vector<128x64xf32>
    %c0_12 = arith.constant 0 : index
    %c0_13 = arith.constant 0 : index
    %22 = vector.load %arg6[%c0_12, %c0_13] : memref<1x64xf32, #tpu.memory_space<vmem>>, vector<1x64xf32>
    %23 = vector.broadcast %22 : vector<1x64xf32> to vector<128x64xf32>
    %24 = arith.addf %21, %23 : vector<128x64xf32>
    %25 = vector.shape_cast %24 : vector<128x64xf32> to vector<8x16x64xf32>
    %c0_14 = arith.constant 0 : index
    %c0_15 = arith.constant 0 : index
    %26 = vector.load %arg7[%c0_14, %c0_15] : memref<32x16xf32, #tpu.memory_space<vmem>>, vector<32x16xf32>
    %c0_16 = arith.constant 0 : index
    %c0_17 = arith.constant 0 : index
    %27 = vector.load %arg8[%c0_16, %c0_17] : memref<32x1xf32, #tpu.memory_space<vmem>>, vector<32x1xf32>
    %c0_18 = arith.constant 0 : index
    %c0_19 = arith.constant 0 : index
    %28 = vector.load %arg9[%c0_18, %c0_19] : memref<32x32xf32, #tpu.memory_space<vmem>>, vector<32x32xf32>
    %c0_20 = arith.constant 0 : index
    %c0_21 = arith.constant 0 : index
    %29 = vector.load %arg10[%c0_20, %c0_21] : memref<32x1xf32, #tpu.memory_space<vmem>>, vector<32x1xf32>
    %30 = vector.shape_cast %26 : vector<32x16xf32> to vector<1x32x16xf32>
    %31 = vector.broadcast %30 : vector<1x32x16xf32> to vector<8x32x16xf32>
    %cst_22 = arith.constant dense<0.000000e+00> : vector<8x32x64xf32>
    %32 = tpu.matmul %31, %25, %cst_22 {dimension_numbers = #tpu.dot_dimension_numbers<[2], [1], [1], [2], [0, 0, 0, 1, 1, 2], [0], [0]>} : vector<8x32x16xf32>, vector<8x16x64xf32>, vector<8x32x64xf32> -> vector<8x32x64xf32>
    %33 = vector.shape_cast %27 : vector<32x1xf32> to vector<1x32x1xf32>
    %34 = vector.broadcast %33 : vector<1x32x1xf32> to vector<8x32x64xf32>
    %35 = arith.addf %32, %34 : vector<8x32x64xf32>
    %cst_23 = arith.constant 5.000000e-01 : f32
    %36 = vector.broadcast %cst_23 : f32 to vector<8x32x64xf32>
    %37 = arith.mulf %36, %35 : vector<8x32x64xf32>
    %cst_24 = arith.constant 4.471500e-02 : f32
    %38 = vector.broadcast %cst_24 : f32 to vector<8x32x64xf32>
    %39 = arith.mulf %38, %35 : vector<8x32x64xf32>
    %40 = arith.mulf %39, %35 : vector<8x32x64xf32>
    %41 = arith.mulf %40, %35 : vector<8x32x64xf32>
    %42 = arith.addf %35, %41 : vector<8x32x64xf32>
    %cst_25 = arith.constant 0.797884583 : f32
    %43 = vector.broadcast %cst_25 : f32 to vector<8x32x64xf32>
    %44 = arith.mulf %43, %42 : vector<8x32x64xf32>
    %45 = math.tanh %44 : vector<8x32x64xf32>
    %cst_26 = arith.constant 1.000000e+00 : f32
    %46 = vector.broadcast %cst_26 : f32 to vector<8x32x64xf32>
    %47 = arith.addf %46, %45 : vector<8x32x64xf32>
    %48 = arith.mulf %37, %47 : vector<8x32x64xf32>
    %49 = vector.shape_cast %28 : vector<32x32xf32> to vector<1x32x32xf32>
    %50 = vector.broadcast %49 : vector<1x32x32xf32> to vector<8x32x32xf32>
    %cst_27 = arith.constant dense<0.000000e+00> : vector<8x32x64xf32>
    %51 = tpu.matmul %50, %48, %cst_27 {dimension_numbers = #tpu.dot_dimension_numbers<[2], [1], [1], [2], [0, 0, 0, 1, 1, 2], [0], [0]>} : vector<8x32x32xf32>, vector<8x32x64xf32>, vector<8x32x64xf32> -> vector<8x32x64xf32>
    %52 = vector.shape_cast %29 : vector<32x1xf32> to vector<1x32x1xf32>
    %53 = vector.broadcast %52 : vector<1x32x1xf32> to vector<8x32x64xf32>
    %54 = arith.addf %51, %53 : vector<8x32x64xf32>
    %c0_28 = arith.constant 0 : index
    %c0_29 = arith.constant 0 : index
    %c0_30 = arith.constant 0 : index
    %55 = vector.load %arg11[%c0_28, %c0_29, %c0_30] : memref<3x1x64xf32, #tpu.memory_space<vmem>>, vector<1x1x64xf32>
    %56 = vector.shape_cast %55 : vector<1x1x64xf32> to vector<1x64xf32>
    %c0_31 = arith.constant 0 : index
    %c0_32 = arith.constant 0 : index
    %c0_33 = arith.constant 0 : index
    %57 = vector.load %arg12[%c0_31, %c0_32, %c0_33] : memref<3x1x64xf32, #tpu.memory_space<vmem>>, vector<1x1x64xf32>
    %58 = vector.shape_cast %57 : vector<1x1x64xf32> to vector<1x64xf32>
    %cst_34 = arith.constant dense<0.000000e+00> : vector<8x32xf32>
    %59 = vector.multi_reduction <add>, %54, %cst_34 [2] : vector<8x32x64xf32> to vector<8x32xf32>
    %60 = vector.shape_cast %59 : vector<8x32xf32> to vector<8x32x1xf32>
    %cst_35 = arith.constant 6.400000e+01 : f32
    %61 = vector.broadcast %cst_35 : f32 to vector<8x32x1xf32>
    %62 = arith.divf %60, %61 : vector<8x32x1xf32>
    %63 = arith.mulf %54, %54 : vector<8x32x64xf32>
    %cst_36 = arith.constant dense<0.000000e+00> : vector<8x32xf32>
    %64 = vector.multi_reduction <add>, %63, %cst_36 [2] : vector<8x32x64xf32> to vector<8x32xf32>
    %65 = vector.shape_cast %64 : vector<8x32xf32> to vector<8x32x1xf32>
    %cst_37 = arith.constant 6.400000e+01 : f32
    %66 = vector.broadcast %cst_37 : f32 to vector<8x32x1xf32>
    %67 = arith.divf %65, %66 : vector<8x32x1xf32>
    %68 = arith.mulf %62, %62 : vector<8x32x1xf32>
    %69 = arith.subf %67, %68 : vector<8x32x1xf32>
    %70 = vector.broadcast %62 : vector<8x32x1xf32> to vector<8x32x64xf32>
    %71 = arith.subf %54, %70 : vector<8x32x64xf32>
    %cst_38 = arith.constant 9.99999974E-6 : f32
    %72 = vector.broadcast %cst_38 : f32 to vector<8x32x1xf32>
    %73 = arith.addf %69, %72 : vector<8x32x1xf32>
    %74 = math.rsqrt %73 : vector<8x32x1xf32>
    %75 = vector.broadcast %74 : vector<8x32x1xf32> to vector<8x32x64xf32>
    %76 = arith.mulf %71, %75 : vector<8x32x64xf32>
    %77 = vector.shape_cast %56 : vector<1x64xf32> to vector<1x1x64xf32>
    %78 = vector.broadcast %77 : vector<1x1x64xf32> to vector<8x32x64xf32>
    %79 = arith.mulf %76, %78 : vector<8x32x64xf32>
    %80 = vector.shape_cast %58 : vector<1x64xf32> to vector<1x1x64xf32>
    %81 = vector.broadcast %80 : vector<1x1x64xf32> to vector<8x32x64xf32>
    %82 = arith.addf %79, %81 : vector<8x32x64xf32>
    %c0_39 = arith.constant 0 : index
    %c0_40 = arith.constant 0 : index
    %c0_41 = arith.constant 0 : index
    %83 = vector.load %arg13[%c0_39, %c0_40, %c0_41] : memref<3x32x32xf32, #tpu.memory_space<vmem>>, vector<1x32x32xf32>
    %84 = vector.shape_cast %83 : vector<1x32x32xf32> to vector<32x32xf32>
    %c0_42 = arith.constant 0 : index
    %c0_43 = arith.constant 0 : index
    %c0_44 = arith.constant 0 : index
    %85 = vector.load %arg14[%c0_42, %c0_43, %c0_44] : memref<3x32x1xf32, #tpu.memory_space<vmem>>, vector<1x32x1xf32>
    %86 = vector.shape_cast %85 : vector<1x32x1xf32> to vector<32x1xf32>
    %c0_45 = arith.constant 0 : index
    %c0_46 = arith.constant 0 : index
    %c0_47 = arith.constant 0 : index
    %87 = vector.load %arg15[%c0_45, %c0_46, %c0_47] : memref<3x32x32xf32, #tpu.memory_space<vmem>>, vector<1x32x32xf32>
    %88 = vector.shape_cast %87 : vector<1x32x32xf32> to vector<32x32xf32>
    %c0_48 = arith.constant 0 : index
    %c0_49 = arith.constant 0 : index
    %c0_50 = arith.constant 0 : index
    %89 = vector.load %arg16[%c0_48, %c0_49, %c0_50] : memref<3x32x1xf32, #tpu.memory_space<vmem>>, vector<1x32x1xf32>
    %90 = vector.shape_cast %89 : vector<1x32x1xf32> to vector<32x1xf32>
    %91 = vector.shape_cast %84 : vector<32x32xf32> to vector<1x32x32xf32>
    %92 = vector.broadcast %91 : vector<1x32x32xf32> to vector<8x32x32xf32>
    %cst_51 = arith.constant dense<0.000000e+00> : vector<8x32x64xf32>
    %93 = tpu.matmul %92, %82, %cst_51 {dimension_numbers = #tpu.dot_dimension_numbers<[2], [1], [1], [2], [0, 0, 0, 1, 1, 2], [0], [0]>} : vector<8x32x32xf32>, vector<8x32x64xf32>, vector<8x32x64xf32> -> vector<8x32x64xf32>
    %94 = vector.shape_cast %86 : vector<32x1xf32> to vector<1x32x1xf32>
    %95 = vector.broadcast %94 : vector<1x32x1xf32> to vector<8x32x64xf32>
    %96 = arith.addf %93, %95 : vector<8x32x64xf32>
    %cst_52 = arith.constant 5.000000e-01 : f32
    %97 = vector.broadcast %cst_52 : f32 to vector<8x32x64xf32>
    %98 = arith.mulf %97, %96 : vector<8x32x64xf32>
    %cst_53 = arith.constant 4.471500e-02 : f32
    %99 = vector.broadcast %cst_53 : f32 to vector<8x32x64xf32>
    %100 = arith.mulf %99, %96 : vector<8x32x64xf32>
    %101 = arith.mulf %100, %96 : vector<8x32x64xf32>
    %102 = arith.mulf %101, %96 : vector<8x32x64xf32>
    %103 = arith.addf %96, %102 : vector<8x32x64xf32>
    %cst_54 = arith.constant 0.797884583 : f32
    %104 = vector.broadcast %cst_54 : f32 to vector<8x32x64xf32>
    %105 = arith.mulf %104, %103 : vector<8x32x64xf32>
    %106 = math.tanh %105 : vector<8x32x64xf32>
    %cst_55 = arith.constant 1.000000e+00 : f32
    %107 = vector.broadcast %cst_55 : f32 to vector<8x32x64xf32>
    %108 = arith.addf %107, %106 : vector<8x32x64xf32>
    %109 = arith.mulf %98, %108 : vector<8x32x64xf32>
    %110 = vector.shape_cast %88 : vector<32x32xf32> to vector<1x32x32xf32>
    %111 = vector.broadcast %110 : vector<1x32x32xf32> to vector<8x32x32xf32>
    %cst_56 = arith.constant dense<0.000000e+00> : vector<8x32x64xf32>
    %112 = tpu.matmul %111, %109, %cst_56 {dimension_numbers = #tpu.dot_dimension_numbers<[2], [1], [1], [2], [0, 0, 0, 1, 1, 2], [0], [0]>} : vector<8x32x32xf32>, vector<8x32x64xf32>, vector<8x32x64xf32> -> vector<8x32x64xf32>
    %113 = vector.shape_cast %90 : vector<32x1xf32> to vector<1x32x1xf32>
    %114 = vector.broadcast %113 : vector<1x32x1xf32> to vector<8x32x64xf32>
    %115 = arith.addf %112, %114 : vector<8x32x64xf32>
    %116 = arith.addf %54, %115 : vector<8x32x64xf32>
    %c0_57 = arith.constant 0 : index
    %c0_58 = arith.constant 0 : index
    %c0_59 = arith.constant 0 : index
    %117 = vector.load %arg17[%c0_57, %c0_58, %c0_59] : memref<3x1x64xf32, #tpu.memory_space<vmem>>, vector<1x1x64xf32>
    %118 = vector.shape_cast %117 : vector<1x1x64xf32> to vector<1x64xf32>
    %c0_60 = arith.constant 0 : index
    %c0_61 = arith.constant 0 : index
    %c0_62 = arith.constant 0 : index
    %119 = vector.load %arg18[%c0_60, %c0_61, %c0_62] : memref<3x1x64xf32, #tpu.memory_space<vmem>>, vector<1x1x64xf32>
    %120 = vector.shape_cast %119 : vector<1x1x64xf32> to vector<1x64xf32>
    %cst_63 = arith.constant dense<0.000000e+00> : vector<8x32xf32>
    %121 = vector.multi_reduction <add>, %116, %cst_63 [2] : vector<8x32x64xf32> to vector<8x32xf32>
    %122 = vector.shape_cast %121 : vector<8x32xf32> to vector<8x32x1xf32>
    %cst_64 = arith.constant 6.400000e+01 : f32
    %123 = vector.broadcast %cst_64 : f32 to vector<8x32x1xf32>
    %124 = arith.divf %122, %123 : vector<8x32x1xf32>
    %125 = arith.mulf %116, %116 : vector<8x32x64xf32>
    %cst_65 = arith.constant dense<0.000000e+00> : vector<8x32xf32>
    %126 = vector.multi_reduction <add>, %125, %cst_65 [2] : vector<8x32x64xf32> to vector<8x32xf32>
    %127 = vector.shape_cast %126 : vector<8x32xf32> to vector<8x32x1xf32>
    %cst_66 = arith.constant 6.400000e+01 : f32
    %128 = vector.broadcast %cst_66 : f32 to vector<8x32x1xf32>
    %129 = arith.divf %127, %128 : vector<8x32x1xf32>
    %130 = arith.mulf %124, %124 : vector<8x32x1xf32>
    %131 = arith.subf %129, %130 : vector<8x32x1xf32>
    %132 = vector.broadcast %124 : vector<8x32x1xf32> to vector<8x32x64xf32>
    %133 = arith.subf %116, %132 : vector<8x32x64xf32>
    %cst_67 = arith.constant 9.99999974E-6 : f32
    %134 = vector.broadcast %cst_67 : f32 to vector<8x32x1xf32>
    %135 = arith.addf %131, %134 : vector<8x32x1xf32>
    %136 = math.rsqrt %135 : vector<8x32x1xf32>
    %137 = vector.broadcast %136 : vector<8x32x1xf32> to vector<8x32x64xf32>
    %138 = arith.mulf %133, %137 : vector<8x32x64xf32>
    %139 = vector.shape_cast %118 : vector<1x64xf32> to vector<1x1x64xf32>
    %140 = vector.broadcast %139 : vector<1x1x64xf32> to vector<8x32x64xf32>
    %141 = arith.mulf %138, %140 : vector<8x32x64xf32>
    %142 = vector.shape_cast %120 : vector<1x64xf32> to vector<1x1x64xf32>
    %143 = vector.broadcast %142 : vector<1x1x64xf32> to vector<8x32x64xf32>
    %144 = arith.addf %141, %143 : vector<8x32x64xf32>
    %145 = vector.shape_cast %144 : vector<8x32x64xf32> to vector<256x64xf32>
    %c0_68 = arith.constant 0 : index
    %c0_69 = arith.constant 0 : index
    %c0_70 = arith.constant 0 : index
    %146 = vector.load %arg19[%c0_68, %c0_69, %c0_70] : memref<3x64x64xf32, #tpu.memory_space<vmem>>, vector<1x64x64xf32>
    %147 = vector.shape_cast %146 : vector<1x64x64xf32> to vector<64x64xf32>
    %c0_71 = arith.constant 0 : index
    %c0_72 = arith.constant 0 : index
    %c0_73 = arith.constant 0 : index
    %148 = vector.load %arg20[%c0_71, %c0_72, %c0_73] : memref<3x1x64xf32, #tpu.memory_space<vmem>>, vector<1x1x64xf32>
    %149 = vector.shape_cast %148 : vector<1x1x64xf32> to vector<1x64xf32>
    %c0_74 = arith.constant 0 : index
    %c0_75 = arith.constant 0 : index
    %c0_76 = arith.constant 0 : index
    %150 = vector.load %arg21[%c0_74, %c0_75, %c0_76] : memref<3x64x64xf32, #tpu.memory_space<vmem>>, vector<1x64x64xf32>
    %151 = vector.shape_cast %150 : vector<1x64x64xf32> to vector<64x64xf32>
    %c0_77 = arith.constant 0 : index
    %c0_78 = arith.constant 0 : index
    %c0_79 = arith.constant 0 : index
    %152 = vector.load %arg22[%c0_77, %c0_78, %c0_79] : memref<3x1x64xf32, #tpu.memory_space<vmem>>, vector<1x1x64xf32>
    %153 = vector.shape_cast %152 : vector<1x1x64xf32> to vector<1x64xf32>
    %cst_80 = arith.constant dense<0.000000e+00> : vector<256x64xf32>
    %154 = tpu.matmul %145, %147, %cst_80 {dimension_numbers = #tpu.dot_dimension_numbers<[1], [0], [0], [1], [0, 0, 1, 1], [], []>} : vector<256x64xf32>, vector<64x64xf32>, vector<256x64xf32> -> vector<256x64xf32>
    %155 = vector.broadcast %149 : vector<1x64xf32> to vector<256x64xf32>
    %156 = arith.addf %154, %155 : vector<256x64xf32>
    %cst_81 = arith.constant 5.000000e-01 : f32
    %157 = vector.broadcast %cst_81 : f32 to vector<256x64xf32>
    %158 = arith.mulf %157, %156 : vector<256x64xf32>
    %cst_82 = arith.constant 4.471500e-02 : f32
    %159 = vector.broadcast %cst_82 : f32 to vector<256x64xf32>
    %160 = arith.mulf %159, %156 : vector<256x64xf32>
    %161 = arith.mulf %160, %156 : vector<256x64xf32>
    %162 = arith.mulf %161, %156 : vector<256x64xf32>
    %163 = arith.addf %156, %162 : vector<256x64xf32>
    %cst_83 = arith.constant 0.797884583 : f32
    %164 = vector.broadcast %cst_83 : f32 to vector<256x64xf32>
    %165 = arith.mulf %164, %163 : vector<256x64xf32>
    %166 = math.tanh %165 : vector<256x64xf32>
    %cst_84 = arith.constant 1.000000e+00 : f32
    %167 = vector.broadcast %cst_84 : f32 to vector<256x64xf32>
    %168 = arith.addf %167, %166 : vector<256x64xf32>
    %169 = arith.mulf %158, %168 : vector<256x64xf32>
    %cst_85 = arith.constant dense<0.000000e+00> : vector<256x64xf32>
    %170 = tpu.matmul %169, %151, %cst_85 {dimension_numbers = #tpu.dot_dimension_numbers<[1], [0], [0], [1], [0, 0, 1, 1], [], []>} : vector<256x64xf32>, vector<64x64xf32>, vector<256x64xf32> -> vector<256x64xf32>
    %171 = vector.broadcast %153 : vector<1x64xf32> to vector<256x64xf32>
    %172 = arith.addf %170, %171 : vector<256x64xf32>
    %173 = vector.shape_cast %172 : vector<256x64xf32> to vector<8x32x64xf32>
    %174 = arith.addf %116, %173 : vector<8x32x64xf32>
    %c1 = arith.constant 1 : index
    %c0_86 = arith.constant 0 : index
    %c0_87 = arith.constant 0 : index
    %175 = vector.load %arg11[%c1, %c0_86, %c0_87] : memref<3x1x64xf32, #tpu.memory_space<vmem>>, vector<1x1x64xf32>
    %176 = vector.shape_cast %175 : vector<1x1x64xf32> to vector<1x64xf32>
    %c1_88 = arith.constant 1 : index
    %c0_89 = arith.constant 0 : index
    %c0_90 = arith.constant 0 : index
    %177 = vector.load %arg12[%c1_88, %c0_89, %c0_90] : memref<3x1x64xf32, #tpu.memory_space<vmem>>, vector<1x1x64xf32>
    %178 = vector.shape_cast %177 : vector<1x1x64xf32> to vector<1x64xf32>
    %cst_91 = arith.constant dense<0.000000e+00> : vector<8x32xf32>
    %179 = vector.multi_reduction <add>, %174, %cst_91 [2] : vector<8x32x64xf32> to vector<8x32xf32>
    %180 = vector.shape_cast %179 : vector<8x32xf32> to vector<8x32x1xf32>
    %cst_92 = arith.constant 6.400000e+01 : f32
    %181 = vector.broadcast %cst_92 : f32 to vector<8x32x1xf32>
    %182 = arith.divf %180, %181 : vector<8x32x1xf32>
    %183 = arith.mulf %174, %174 : vector<8x32x64xf32>
    %cst_93 = arith.constant dense<0.000000e+00> : vector<8x32xf32>
    %184 = vector.multi_reduction <add>, %183, %cst_93 [2] : vector<8x32x64xf32> to vector<8x32xf32>
    %185 = vector.shape_cast %184 : vector<8x32xf32> to vector<8x32x1xf32>
    %cst_94 = arith.constant 6.400000e+01 : f32
    %186 = vector.broadcast %cst_94 : f32 to vector<8x32x1xf32>
    %187 = arith.divf %185, %186 : vector<8x32x1xf32>
    %188 = arith.mulf %182, %182 : vector<8x32x1xf32>
    %189 = arith.subf %187, %188 : vector<8x32x1xf32>
    %190 = vector.broadcast %182 : vector<8x32x1xf32> to vector<8x32x64xf32>
    %191 = arith.subf %174, %190 : vector<8x32x64xf32>
    %cst_95 = arith.constant 9.99999974E-6 : f32
    %192 = vector.broadcast %cst_95 : f32 to vector<8x32x1xf32>
    %193 = arith.addf %189, %192 : vector<8x32x1xf32>
    %194 = math.rsqrt %193 : vector<8x32x1xf32>
    %195 = vector.broadcast %194 : vector<8x32x1xf32> to vector<8x32x64xf32>
    %196 = arith.mulf %191, %195 : vector<8x32x64xf32>
    %197 = vector.shape_cast %176 : vector<1x64xf32> to vector<1x1x64xf32>
    %198 = vector.broadcast %197 : vector<1x1x64xf32> to vector<8x32x64xf32>
    %199 = arith.mulf %196, %198 : vector<8x32x64xf32>
    %200 = vector.shape_cast %178 : vector<1x64xf32> to vector<1x1x64xf32>
    %201 = vector.broadcast %200 : vector<1x1x64xf32> to vector<8x32x64xf32>
    %202 = arith.addf %199, %201 : vector<8x32x64xf32>
    %c1_96 = arith.constant 1 : index
    %c0_97 = arith.constant 0 : index
    %c0_98 = arith.constant 0 : index
    %203 = vector.load %arg13[%c1_96, %c0_97, %c0_98] : memref<3x32x32xf32, #tpu.memory_space<vmem>>, vector<1x32x32xf32>
    %204 = vector.shape_cast %203 : vector<1x32x32xf32> to vector<32x32xf32>
    %c1_99 = arith.constant 1 : index
    %c0_100 = arith.constant 0 : index
    %c0_101 = arith.constant 0 : index
    %205 = vector.load %arg14[%c1_99, %c0_100, %c0_101] : memref<3x32x1xf32, #tpu.memory_space<vmem>>, vector<1x32x1xf32>
    %206 = vector.shape_cast %205 : vector<1x32x1xf32> to vector<32x1xf32>
    %c1_102 = arith.constant 1 : index
    %c0_103 = arith.constant 0 : index
    %c0_104 = arith.constant 0 : index
    %207 = vector.load %arg15[%c1_102, %c0_103, %c0_104] : memref<3x32x32xf32, #tpu.memory_space<vmem>>, vector<1x32x32xf32>
    %208 = vector.shape_cast %207 : vector<1x32x32xf32> to vector<32x32xf32>
    %c1_105 = arith.constant 1 : index
    %c0_106 = arith.constant 0 : index
    %c0_107 = arith.constant 0 : index
    %209 = vector.load %arg16[%c1_105, %c0_106, %c0_107] : memref<3x32x1xf32, #tpu.memory_space<vmem>>, vector<1x32x1xf32>
    %210 = vector.shape_cast %209 : vector<1x32x1xf32> to vector<32x1xf32>
    %211 = vector.shape_cast %204 : vector<32x32xf32> to vector<1x32x32xf32>
    %212 = vector.broadcast %211 : vector<1x32x32xf32> to vector<8x32x32xf32>
    %cst_108 = arith.constant dense<0.000000e+00> : vector<8x32x64xf32>
    %213 = tpu.matmul %212, %202, %cst_108 {dimension_numbers = #tpu.dot_dimension_numbers<[2], [1], [1], [2], [0, 0, 0, 1, 1, 2], [0], [0]>} : vector<8x32x32xf32>, vector<8x32x64xf32>, vector<8x32x64xf32> -> vector<8x32x64xf32>
    %214 = vector.shape_cast %206 : vector<32x1xf32> to vector<1x32x1xf32>
    %215 = vector.broadcast %214 : vector<1x32x1xf32> to vector<8x32x64xf32>
    %216 = arith.addf %213, %215 : vector<8x32x64xf32>
    %cst_109 = arith.constant 5.000000e-01 : f32
    %217 = vector.broadcast %cst_109 : f32 to vector<8x32x64xf32>
    %218 = arith.mulf %217, %216 : vector<8x32x64xf32>
    %cst_110 = arith.constant 4.471500e-02 : f32
    %219 = vector.broadcast %cst_110 : f32 to vector<8x32x64xf32>
    %220 = arith.mulf %219, %216 : vector<8x32x64xf32>
    %221 = arith.mulf %220, %216 : vector<8x32x64xf32>
    %222 = arith.mulf %221, %216 : vector<8x32x64xf32>
    %223 = arith.addf %216, %222 : vector<8x32x64xf32>
    %cst_111 = arith.constant 0.797884583 : f32
    %224 = vector.broadcast %cst_111 : f32 to vector<8x32x64xf32>
    %225 = arith.mulf %224, %223 : vector<8x32x64xf32>
    %226 = math.tanh %225 : vector<8x32x64xf32>
    %cst_112 = arith.constant 1.000000e+00 : f32
    %227 = vector.broadcast %cst_112 : f32 to vector<8x32x64xf32>
    %228 = arith.addf %227, %226 : vector<8x32x64xf32>
    %229 = arith.mulf %218, %228 : vector<8x32x64xf32>
    %230 = vector.shape_cast %208 : vector<32x32xf32> to vector<1x32x32xf32>
    %231 = vector.broadcast %230 : vector<1x32x32xf32> to vector<8x32x32xf32>
    %cst_113 = arith.constant dense<0.000000e+00> : vector<8x32x64xf32>
    %232 = tpu.matmul %231, %229, %cst_113 {dimension_numbers = #tpu.dot_dimension_numbers<[2], [1], [1], [2], [0, 0, 0, 1, 1, 2], [0], [0]>} : vector<8x32x32xf32>, vector<8x32x64xf32>, vector<8x32x64xf32> -> vector<8x32x64xf32>
    %233 = vector.shape_cast %210 : vector<32x1xf32> to vector<1x32x1xf32>
    %234 = vector.broadcast %233 : vector<1x32x1xf32> to vector<8x32x64xf32>
    %235 = arith.addf %232, %234 : vector<8x32x64xf32>
    %236 = arith.addf %174, %235 : vector<8x32x64xf32>
    %c1_114 = arith.constant 1 : index
    %c0_115 = arith.constant 0 : index
    %c0_116 = arith.constant 0 : index
    %237 = vector.load %arg17[%c1_114, %c0_115, %c0_116] : memref<3x1x64xf32, #tpu.memory_space<vmem>>, vector<1x1x64xf32>
    %238 = vector.shape_cast %237 : vector<1x1x64xf32> to vector<1x64xf32>
    %c1_117 = arith.constant 1 : index
    %c0_118 = arith.constant 0 : index
    %c0_119 = arith.constant 0 : index
    %239 = vector.load %arg18[%c1_117, %c0_118, %c0_119] : memref<3x1x64xf32, #tpu.memory_space<vmem>>, vector<1x1x64xf32>
    %240 = vector.shape_cast %239 : vector<1x1x64xf32> to vector<1x64xf32>
    %cst_120 = arith.constant dense<0.000000e+00> : vector<8x32xf32>
    %241 = vector.multi_reduction <add>, %236, %cst_120 [2] : vector<8x32x64xf32> to vector<8x32xf32>
    %242 = vector.shape_cast %241 : vector<8x32xf32> to vector<8x32x1xf32>
    %cst_121 = arith.constant 6.400000e+01 : f32
    %243 = vector.broadcast %cst_121 : f32 to vector<8x32x1xf32>
    %244 = arith.divf %242, %243 : vector<8x32x1xf32>
    %245 = arith.mulf %236, %236 : vector<8x32x64xf32>
    %cst_122 = arith.constant dense<0.000000e+00> : vector<8x32xf32>
    %246 = vector.multi_reduction <add>, %245, %cst_122 [2] : vector<8x32x64xf32> to vector<8x32xf32>
    %247 = vector.shape_cast %246 : vector<8x32xf32> to vector<8x32x1xf32>
    %cst_123 = arith.constant 6.400000e+01 : f32
    %248 = vector.broadcast %cst_123 : f32 to vector<8x32x1xf32>
    %249 = arith.divf %247, %248 : vector<8x32x1xf32>
    %250 = arith.mulf %244, %244 : vector<8x32x1xf32>
    %251 = arith.subf %249, %250 : vector<8x32x1xf32>
    %252 = vector.broadcast %244 : vector<8x32x1xf32> to vector<8x32x64xf32>
    %253 = arith.subf %236, %252 : vector<8x32x64xf32>
    %cst_124 = arith.constant 9.99999974E-6 : f32
    %254 = vector.broadcast %cst_124 : f32 to vector<8x32x1xf32>
    %255 = arith.addf %251, %254 : vector<8x32x1xf32>
    %256 = math.rsqrt %255 : vector<8x32x1xf32>
    %257 = vector.broadcast %256 : vector<8x32x1xf32> to vector<8x32x64xf32>
    %258 = arith.mulf %253, %257 : vector<8x32x64xf32>
    %259 = vector.shape_cast %238 : vector<1x64xf32> to vector<1x1x64xf32>
    %260 = vector.broadcast %259 : vector<1x1x64xf32> to vector<8x32x64xf32>
    %261 = arith.mulf %258, %260 : vector<8x32x64xf32>
    %262 = vector.shape_cast %240 : vector<1x64xf32> to vector<1x1x64xf32>
    %263 = vector.broadcast %262 : vector<1x1x64xf32> to vector<8x32x64xf32>
    %264 = arith.addf %261, %263 : vector<8x32x64xf32>
    %265 = vector.shape_cast %264 : vector<8x32x64xf32> to vector<256x64xf32>
    %c1_125 = arith.constant 1 : index
    %c0_126 = arith.constant 0 : index
    %c0_127 = arith.constant 0 : index
    %266 = vector.load %arg19[%c1_125, %c0_126, %c0_127] : memref<3x64x64xf32, #tpu.memory_space<vmem>>, vector<1x64x64xf32>
    %267 = vector.shape_cast %266 : vector<1x64x64xf32> to vector<64x64xf32>
    %c1_128 = arith.constant 1 : index
    %c0_129 = arith.constant 0 : index
    %c0_130 = arith.constant 0 : index
    %268 = vector.load %arg20[%c1_128, %c0_129, %c0_130] : memref<3x1x64xf32, #tpu.memory_space<vmem>>, vector<1x1x64xf32>
    %269 = vector.shape_cast %268 : vector<1x1x64xf32> to vector<1x64xf32>
    %c1_131 = arith.constant 1 : index
    %c0_132 = arith.constant 0 : index
    %c0_133 = arith.constant 0 : index
    %270 = vector.load %arg21[%c1_131, %c0_132, %c0_133] : memref<3x64x64xf32, #tpu.memory_space<vmem>>, vector<1x64x64xf32>
    %271 = vector.shape_cast %270 : vector<1x64x64xf32> to vector<64x64xf32>
    %c1_134 = arith.constant 1 : index
    %c0_135 = arith.constant 0 : index
    %c0_136 = arith.constant 0 : index
    %272 = vector.load %arg22[%c1_134, %c0_135, %c0_136] : memref<3x1x64xf32, #tpu.memory_space<vmem>>, vector<1x1x64xf32>
    %273 = vector.shape_cast %272 : vector<1x1x64xf32> to vector<1x64xf32>
    %cst_137 = arith.constant dense<0.000000e+00> : vector<256x64xf32>
    %274 = tpu.matmul %265, %267, %cst_137 {dimension_numbers = #tpu.dot_dimension_numbers<[1], [0], [0], [1], [0, 0, 1, 1], [], []>} : vector<256x64xf32>, vector<64x64xf32>, vector<256x64xf32> -> vector<256x64xf32>
    %275 = vector.broadcast %269 : vector<1x64xf32> to vector<256x64xf32>
    %276 = arith.addf %274, %275 : vector<256x64xf32>
    %cst_138 = arith.constant 5.000000e-01 : f32
    %277 = vector.broadcast %cst_138 : f32 to vector<256x64xf32>
    %278 = arith.mulf %277, %276 : vector<256x64xf32>
    %cst_139 = arith.constant 4.471500e-02 : f32
    %279 = vector.broadcast %cst_139 : f32 to vector<256x64xf32>
    %280 = arith.mulf %279, %276 : vector<256x64xf32>
    %281 = arith.mulf %280, %276 : vector<256x64xf32>
    %282 = arith.mulf %281, %276 : vector<256x64xf32>
    %283 = arith.addf %276, %282 : vector<256x64xf32>
    %cst_140 = arith.constant 0.797884583 : f32
    %284 = vector.broadcast %cst_140 : f32 to vector<256x64xf32>
    %285 = arith.mulf %284, %283 : vector<256x64xf32>
    %286 = math.tanh %285 : vector<256x64xf32>
    %cst_141 = arith.constant 1.000000e+00 : f32
    %287 = vector.broadcast %cst_141 : f32 to vector<256x64xf32>
    %288 = arith.addf %287, %286 : vector<256x64xf32>
    %289 = arith.mulf %278, %288 : vector<256x64xf32>
    %cst_142 = arith.constant dense<0.000000e+00> : vector<256x64xf32>
    %290 = tpu.matmul %289, %271, %cst_142 {dimension_numbers = #tpu.dot_dimension_numbers<[1], [0], [0], [1], [0, 0, 1, 1], [], []>} : vector<256x64xf32>, vector<64x64xf32>, vector<256x64xf32> -> vector<256x64xf32>
    %291 = vector.broadcast %273 : vector<1x64xf32> to vector<256x64xf32>
    %292 = arith.addf %290, %291 : vector<256x64xf32>
    %293 = vector.shape_cast %292 : vector<256x64xf32> to vector<8x32x64xf32>
    %294 = arith.addf %236, %293 : vector<8x32x64xf32>
    %c2 = arith.constant 2 : index
    %c0_143 = arith.constant 0 : index
    %c0_144 = arith.constant 0 : index
    %295 = vector.load %arg11[%c2, %c0_143, %c0_144] : memref<3x1x64xf32, #tpu.memory_space<vmem>>, vector<1x1x64xf32>
    %296 = vector.shape_cast %295 : vector<1x1x64xf32> to vector<1x64xf32>
    %c2_145 = arith.constant 2 : index
    %c0_146 = arith.constant 0 : index
    %c0_147 = arith.constant 0 : index
    %297 = vector.load %arg12[%c2_145, %c0_146, %c0_147] : memref<3x1x64xf32, #tpu.memory_space<vmem>>, vector<1x1x64xf32>
    %298 = vector.shape_cast %297 : vector<1x1x64xf32> to vector<1x64xf32>
    %cst_148 = arith.constant dense<0.000000e+00> : vector<8x32xf32>
    %299 = vector.multi_reduction <add>, %294, %cst_148 [2] : vector<8x32x64xf32> to vector<8x32xf32>
    %300 = vector.shape_cast %299 : vector<8x32xf32> to vector<8x32x1xf32>
    %cst_149 = arith.constant 6.400000e+01 : f32
    %301 = vector.broadcast %cst_149 : f32 to vector<8x32x1xf32>
    %302 = arith.divf %300, %301 : vector<8x32x1xf32>
    %303 = arith.mulf %294, %294 : vector<8x32x64xf32>
    %cst_150 = arith.constant dense<0.000000e+00> : vector<8x32xf32>
    %304 = vector.multi_reduction <add>, %303, %cst_150 [2] : vector<8x32x64xf32> to vector<8x32xf32>
    %305 = vector.shape_cast %304 : vector<8x32xf32> to vector<8x32x1xf32>
    %cst_151 = arith.constant 6.400000e+01 : f32
    %306 = vector.broadcast %cst_151 : f32 to vector<8x32x1xf32>
    %307 = arith.divf %305, %306 : vector<8x32x1xf32>
    %308 = arith.mulf %302, %302 : vector<8x32x1xf32>
    %309 = arith.subf %307, %308 : vector<8x32x1xf32>
    %310 = vector.broadcast %302 : vector<8x32x1xf32> to vector<8x32x64xf32>
    %311 = arith.subf %294, %310 : vector<8x32x64xf32>
    %cst_152 = arith.constant 9.99999974E-6 : f32
    %312 = vector.broadcast %cst_152 : f32 to vector<8x32x1xf32>
    %313 = arith.addf %309, %312 : vector<8x32x1xf32>
    %314 = math.rsqrt %313 : vector<8x32x1xf32>
    %315 = vector.broadcast %314 : vector<8x32x1xf32> to vector<8x32x64xf32>
    %316 = arith.mulf %311, %315 : vector<8x32x64xf32>
    %317 = vector.shape_cast %296 : vector<1x64xf32> to vector<1x1x64xf32>
    %318 = vector.broadcast %317 : vector<1x1x64xf32> to vector<8x32x64xf32>
    %319 = arith.mulf %316, %318 : vector<8x32x64xf32>
    %320 = vector.shape_cast %298 : vector<1x64xf32> to vector<1x1x64xf32>
    %321 = vector.broadcast %320 : vector<1x1x64xf32> to vector<8x32x64xf32>
    %322 = arith.addf %319, %321 : vector<8x32x64xf32>
    %c2_153 = arith.constant 2 : index
    %c0_154 = arith.constant 0 : index
    %c0_155 = arith.constant 0 : index
    %323 = vector.load %arg13[%c2_153, %c0_154, %c0_155] : memref<3x32x32xf32, #tpu.memory_space<vmem>>, vector<1x32x32xf32>
    %324 = vector.shape_cast %323 : vector<1x32x32xf32> to vector<32x32xf32>
    %c2_156 = arith.constant 2 : index
    %c0_157 = arith.constant 0 : index
    %c0_158 = arith.constant 0 : index
    %325 = vector.load %arg14[%c2_156, %c0_157, %c0_158] : memref<3x32x1xf32, #tpu.memory_space<vmem>>, vector<1x32x1xf32>
    %326 = vector.shape_cast %325 : vector<1x32x1xf32> to vector<32x1xf32>
    %c2_159 = arith.constant 2 : index
    %c0_160 = arith.constant 0 : index
    %c0_161 = arith.constant 0 : index
    %327 = vector.load %arg15[%c2_159, %c0_160, %c0_161] : memref<3x32x32xf32, #tpu.memory_space<vmem>>, vector<1x32x32xf32>
    %328 = vector.shape_cast %327 : vector<1x32x32xf32> to vector<32x32xf32>
    %c2_162 = arith.constant 2 : index
    %c0_163 = arith.constant 0 : index
    %c0_164 = arith.constant 0 : index
    %329 = vector.load %arg16[%c2_162, %c0_163, %c0_164] : memref<3x32x1xf32, #tpu.memory_space<vmem>>, vector<1x32x1xf32>
    %330 = vector.shape_cast %329 : vector<1x32x1xf32> to vector<32x1xf32>
    %331 = vector.shape_cast %324 : vector<32x32xf32> to vector<1x32x32xf32>
    %332 = vector.broadcast %331 : vector<1x32x32xf32> to vector<8x32x32xf32>
    %cst_165 = arith.constant dense<0.000000e+00> : vector<8x32x64xf32>
    %333 = tpu.matmul %332, %322, %cst_165 {dimension_numbers = #tpu.dot_dimension_numbers<[2], [1], [1], [2], [0, 0, 0, 1, 1, 2], [0], [0]>} : vector<8x32x32xf32>, vector<8x32x64xf32>, vector<8x32x64xf32> -> vector<8x32x64xf32>
    %334 = vector.shape_cast %326 : vector<32x1xf32> to vector<1x32x1xf32>
    %335 = vector.broadcast %334 : vector<1x32x1xf32> to vector<8x32x64xf32>
    %336 = arith.addf %333, %335 : vector<8x32x64xf32>
    %cst_166 = arith.constant 5.000000e-01 : f32
    %337 = vector.broadcast %cst_166 : f32 to vector<8x32x64xf32>
    %338 = arith.mulf %337, %336 : vector<8x32x64xf32>
    %cst_167 = arith.constant 4.471500e-02 : f32
    %339 = vector.broadcast %cst_167 : f32 to vector<8x32x64xf32>
    %340 = arith.mulf %339, %336 : vector<8x32x64xf32>
    %341 = arith.mulf %340, %336 : vector<8x32x64xf32>
    %342 = arith.mulf %341, %336 : vector<8x32x64xf32>
    %343 = arith.addf %336, %342 : vector<8x32x64xf32>
    %cst_168 = arith.constant 0.797884583 : f32
    %344 = vector.broadcast %cst_168 : f32 to vector<8x32x64xf32>
    %345 = arith.mulf %344, %343 : vector<8x32x64xf32>
    %346 = math.tanh %345 : vector<8x32x64xf32>
    %cst_169 = arith.constant 1.000000e+00 : f32
    %347 = vector.broadcast %cst_169 : f32 to vector<8x32x64xf32>
    %348 = arith.addf %347, %346 : vector<8x32x64xf32>
    %349 = arith.mulf %338, %348 : vector<8x32x64xf32>
    %350 = vector.shape_cast %328 : vector<32x32xf32> to vector<1x32x32xf32>
    %351 = vector.broadcast %350 : vector<1x32x32xf32> to vector<8x32x32xf32>
    %cst_170 = arith.constant dense<0.000000e+00> : vector<8x32x64xf32>
    %352 = tpu.matmul %351, %349, %cst_170 {dimension_numbers = #tpu.dot_dimension_numbers<[2], [1], [1], [2], [0, 0, 0, 1, 1, 2], [0], [0]>} : vector<8x32x32xf32>, vector<8x32x64xf32>, vector<8x32x64xf32> -> vector<8x32x64xf32>
    %353 = vector.shape_cast %330 : vector<32x1xf32> to vector<1x32x1xf32>
    %354 = vector.broadcast %353 : vector<1x32x1xf32> to vector<8x32x64xf32>
    %355 = arith.addf %352, %354 : vector<8x32x64xf32>
    %356 = arith.addf %294, %355 : vector<8x32x64xf32>
    %c2_171 = arith.constant 2 : index
    %c0_172 = arith.constant 0 : index
    %c0_173 = arith.constant 0 : index
    %357 = vector.load %arg17[%c2_171, %c0_172, %c0_173] : memref<3x1x64xf32, #tpu.memory_space<vmem>>, vector<1x1x64xf32>
    %358 = vector.shape_cast %357 : vector<1x1x64xf32> to vector<1x64xf32>
    %c2_174 = arith.constant 2 : index
    %c0_175 = arith.constant 0 : index
    %c0_176 = arith.constant 0 : index
    %359 = vector.load %arg18[%c2_174, %c0_175, %c0_176] : memref<3x1x64xf32, #tpu.memory_space<vmem>>, vector<1x1x64xf32>
    %360 = vector.shape_cast %359 : vector<1x1x64xf32> to vector<1x64xf32>
    %cst_177 = arith.constant dense<0.000000e+00> : vector<8x32xf32>
    %361 = vector.multi_reduction <add>, %356, %cst_177 [2] : vector<8x32x64xf32> to vector<8x32xf32>
    %362 = vector.shape_cast %361 : vector<8x32xf32> to vector<8x32x1xf32>
    %cst_178 = arith.constant 6.400000e+01 : f32
    %363 = vector.broadcast %cst_178 : f32 to vector<8x32x1xf32>
    %364 = arith.divf %362, %363 : vector<8x32x1xf32>
    %365 = arith.mulf %356, %356 : vector<8x32x64xf32>
    %cst_179 = arith.constant dense<0.000000e+00> : vector<8x32xf32>
    %366 = vector.multi_reduction <add>, %365, %cst_179 [2] : vector<8x32x64xf32> to vector<8x32xf32>
    %367 = vector.shape_cast %366 : vector<8x32xf32> to vector<8x32x1xf32>
    %cst_180 = arith.constant 6.400000e+01 : f32
    %368 = vector.broadcast %cst_180 : f32 to vector<8x32x1xf32>
    %369 = arith.divf %367, %368 : vector<8x32x1xf32>
    %370 = arith.mulf %364, %364 : vector<8x32x1xf32>
    %371 = arith.subf %369, %370 : vector<8x32x1xf32>
    %372 = vector.broadcast %364 : vector<8x32x1xf32> to vector<8x32x64xf32>
    %373 = arith.subf %356, %372 : vector<8x32x64xf32>
    %cst_181 = arith.constant 9.99999974E-6 : f32
    %374 = vector.broadcast %cst_181 : f32 to vector<8x32x1xf32>
    %375 = arith.addf %371, %374 : vector<8x32x1xf32>
    %376 = math.rsqrt %375 : vector<8x32x1xf32>
    %377 = vector.broadcast %376 : vector<8x32x1xf32> to vector<8x32x64xf32>
    %378 = arith.mulf %373, %377 : vector<8x32x64xf32>
    %379 = vector.shape_cast %358 : vector<1x64xf32> to vector<1x1x64xf32>
    %380 = vector.broadcast %379 : vector<1x1x64xf32> to vector<8x32x64xf32>
    %381 = arith.mulf %378, %380 : vector<8x32x64xf32>
    %382 = vector.shape_cast %360 : vector<1x64xf32> to vector<1x1x64xf32>
    %383 = vector.broadcast %382 : vector<1x1x64xf32> to vector<8x32x64xf32>
    %384 = arith.addf %381, %383 : vector<8x32x64xf32>
    %385 = vector.shape_cast %384 : vector<8x32x64xf32> to vector<256x64xf32>
    %c2_182 = arith.constant 2 : index
    %c0_183 = arith.constant 0 : index
    %c0_184 = arith.constant 0 : index
    %386 = vector.load %arg19[%c2_182, %c0_183, %c0_184] : memref<3x64x64xf32, #tpu.memory_space<vmem>>, vector<1x64x64xf32>
    %387 = vector.shape_cast %386 : vector<1x64x64xf32> to vector<64x64xf32>
    %c2_185 = arith.constant 2 : index
    %c0_186 = arith.constant 0 : index
    %c0_187 = arith.constant 0 : index
    %388 = vector.load %arg20[%c2_185, %c0_186, %c0_187] : memref<3x1x64xf32, #tpu.memory_space<vmem>>, vector<1x1x64xf32>
    %389 = vector.shape_cast %388 : vector<1x1x64xf32> to vector<1x64xf32>
    %c2_188 = arith.constant 2 : index
    %c0_189 = arith.constant 0 : index
    %c0_190 = arith.constant 0 : index
    %390 = vector.load %arg21[%c2_188, %c0_189, %c0_190] : memref<3x64x64xf32, #tpu.memory_space<vmem>>, vector<1x64x64xf32>
    %391 = vector.shape_cast %390 : vector<1x64x64xf32> to vector<64x64xf32>
    %c2_191 = arith.constant 2 : index
    %c0_192 = arith.constant 0 : index
    %c0_193 = arith.constant 0 : index
    %392 = vector.load %arg22[%c2_191, %c0_192, %c0_193] : memref<3x1x64xf32, #tpu.memory_space<vmem>>, vector<1x1x64xf32>
    %393 = vector.shape_cast %392 : vector<1x1x64xf32> to vector<1x64xf32>
    %cst_194 = arith.constant dense<0.000000e+00> : vector<256x64xf32>
    %394 = tpu.matmul %385, %387, %cst_194 {dimension_numbers = #tpu.dot_dimension_numbers<[1], [0], [0], [1], [0, 0, 1, 1], [], []>} : vector<256x64xf32>, vector<64x64xf32>, vector<256x64xf32> -> vector<256x64xf32>
    %395 = vector.broadcast %389 : vector<1x64xf32> to vector<256x64xf32>
    %396 = arith.addf %394, %395 : vector<256x64xf32>
    %cst_195 = arith.constant 5.000000e-01 : f32
    %397 = vector.broadcast %cst_195 : f32 to vector<256x64xf32>
    %398 = arith.mulf %397, %396 : vector<256x64xf32>
    %cst_196 = arith.constant 4.471500e-02 : f32
    %399 = vector.broadcast %cst_196 : f32 to vector<256x64xf32>
    %400 = arith.mulf %399, %396 : vector<256x64xf32>
    %401 = arith.mulf %400, %396 : vector<256x64xf32>
    %402 = arith.mulf %401, %396 : vector<256x64xf32>
    %403 = arith.addf %396, %402 : vector<256x64xf32>
    %cst_197 = arith.constant 0.797884583 : f32
    %404 = vector.broadcast %cst_197 : f32 to vector<256x64xf32>
    %405 = arith.mulf %404, %403 : vector<256x64xf32>
    %406 = math.tanh %405 : vector<256x64xf32>
    %cst_198 = arith.constant 1.000000e+00 : f32
    %407 = vector.broadcast %cst_198 : f32 to vector<256x64xf32>
    %408 = arith.addf %407, %406 : vector<256x64xf32>
    %409 = arith.mulf %398, %408 : vector<256x64xf32>
    %cst_199 = arith.constant dense<0.000000e+00> : vector<256x64xf32>
    %410 = tpu.matmul %409, %391, %cst_199 {dimension_numbers = #tpu.dot_dimension_numbers<[1], [0], [0], [1], [0, 0, 1, 1], [], []>} : vector<256x64xf32>, vector<64x64xf32>, vector<256x64xf32> -> vector<256x64xf32>
    %411 = vector.broadcast %393 : vector<1x64xf32> to vector<256x64xf32>
    %412 = arith.addf %410, %411 : vector<256x64xf32>
    %413 = vector.shape_cast %412 : vector<256x64xf32> to vector<8x32x64xf32>
    %414 = arith.addf %356, %413 : vector<8x32x64xf32>
    %cst_200 = arith.constant dense<0.000000e+00> : vector<8x64xf32>
    %415 = vector.multi_reduction <add>, %414, %cst_200 [1] : vector<8x32x64xf32> to vector<8x64xf32>
    %cst_201 = arith.constant 3.200000e+01 : f32
    %416 = vector.broadcast %cst_201 : f32 to vector<8x64xf32>
    %417 = arith.divf %415, %416 : vector<8x64xf32>
    %c0_202 = arith.constant 0 : index
    %c0_203 = arith.constant 0 : index
    %418 = vector.load %arg2[%c0_202, %c0_203] : memref<8x64xf32, #tpu.memory_space<vmem>>, vector<8x64xf32>
    %419 = arith.addf %417, %418 : vector<8x64xf32>
    %c0_204 = arith.constant 0 : index
    %c0_205 = arith.constant 0 : index
    %420 = vector.load %arg23[%c0_204, %c0_205] : memref<1x64xf32, #tpu.memory_space<vmem>>, vector<1x64xf32>
    %c0_206 = arith.constant 0 : index
    %c0_207 = arith.constant 0 : index
    %421 = vector.load %arg24[%c0_206, %c0_207] : memref<1x64xf32, #tpu.memory_space<vmem>>, vector<1x64xf32>
    %cst_208 = arith.constant dense<0.000000e+00> : vector<8xf32>
    %422 = vector.multi_reduction <add>, %419, %cst_208 [1] : vector<8x64xf32> to vector<8xf32>
    %423 = vector.shape_cast %422 : vector<8xf32> to vector<8x1xf32>
    %cst_209 = arith.constant 6.400000e+01 : f32
    %424 = vector.broadcast %cst_209 : f32 to vector<8x1xf32>
    %425 = arith.divf %423, %424 : vector<8x1xf32>
    %426 = arith.mulf %419, %419 : vector<8x64xf32>
    %cst_210 = arith.constant dense<0.000000e+00> : vector<8xf32>
    %427 = vector.multi_reduction <add>, %426, %cst_210 [1] : vector<8x64xf32> to vector<8xf32>
    %428 = vector.shape_cast %427 : vector<8xf32> to vector<8x1xf32>
    %cst_211 = arith.constant 6.400000e+01 : f32
    %429 = vector.broadcast %cst_211 : f32 to vector<8x1xf32>
    %430 = arith.divf %428, %429 : vector<8x1xf32>
    %431 = arith.mulf %425, %425 : vector<8x1xf32>
    %432 = arith.subf %430, %431 : vector<8x1xf32>
    %433 = vector.broadcast %425 : vector<8x1xf32> to vector<8x64xf32>
    %434 = arith.subf %419, %433 : vector<8x64xf32>
    %cst_212 = arith.constant 9.99999974E-6 : f32
    %435 = vector.broadcast %cst_212 : f32 to vector<8x1xf32>
    %436 = arith.addf %432, %435 : vector<8x1xf32>
    %437 = math.rsqrt %436 : vector<8x1xf32>
    %438 = vector.broadcast %437 : vector<8x1xf32> to vector<8x64xf32>
    %439 = arith.mulf %434, %438 : vector<8x64xf32>
    %440 = vector.broadcast %420 : vector<1x64xf32> to vector<8x64xf32>
    %441 = arith.mulf %439, %440 : vector<8x64xf32>
    %442 = vector.broadcast %421 : vector<1x64xf32> to vector<8x64xf32>
    %443 = arith.addf %441, %442 : vector<8x64xf32>
    %c0_213 = arith.constant 0 : index
    %c0_214 = arith.constant 0 : index
    %444 = vector.load %arg25[%c0_213, %c0_214] : memref<64x32xf32, #tpu.memory_space<vmem>>, vector<64x32xf32>
    %c0_215 = arith.constant 0 : index
    %c0_216 = arith.constant 0 : index
    %445 = vector.load %arg26[%c0_215, %c0_216] : memref<1x32xf32, #tpu.memory_space<vmem>>, vector<1x32xf32>
    %c0_217 = arith.constant 0 : index
    %c0_218 = arith.constant 0 : index
    %446 = vector.load %arg27[%c0_217, %c0_218] : memref<32x32xf32, #tpu.memory_space<vmem>>, vector<32x32xf32>
    %c0_219 = arith.constant 0 : index
    %c0_220 = arith.constant 0 : index
    %447 = vector.load %arg28[%c0_219, %c0_220] : memref<1x32xf32, #tpu.memory_space<vmem>>, vector<1x32xf32>
    %cst_221 = arith.constant dense<0.000000e+00> : vector<8x32xf32>
    %448 = tpu.matmul %443, %444, %cst_221 {dimension_numbers = #tpu.dot_dimension_numbers<[1], [0], [0], [1], [0, 0, 1, 1], [], []>} : vector<8x64xf32>, vector<64x32xf32>, vector<8x32xf32> -> vector<8x32xf32>
    %449 = vector.broadcast %445 : vector<1x32xf32> to vector<8x32xf32>
    %450 = arith.addf %448, %449 : vector<8x32xf32>
    %cst_222 = arith.constant 5.000000e-01 : f32
    %451 = vector.broadcast %cst_222 : f32 to vector<8x32xf32>
    %452 = arith.mulf %451, %450 : vector<8x32xf32>
    %cst_223 = arith.constant 4.471500e-02 : f32
    %453 = vector.broadcast %cst_223 : f32 to vector<8x32xf32>
    %454 = arith.mulf %453, %450 : vector<8x32xf32>
    %455 = arith.mulf %454, %450 : vector<8x32xf32>
    %456 = arith.mulf %455, %450 : vector<8x32xf32>
    %457 = arith.addf %450, %456 : vector<8x32xf32>
    %cst_224 = arith.constant 0.797884583 : f32
    %458 = vector.broadcast %cst_224 : f32 to vector<8x32xf32>
    %459 = arith.mulf %458, %457 : vector<8x32xf32>
    %460 = math.tanh %459 : vector<8x32xf32>
    %cst_225 = arith.constant 1.000000e+00 : f32
    %461 = vector.broadcast %cst_225 : f32 to vector<8x32xf32>
    %462 = arith.addf %461, %460 : vector<8x32xf32>
    %463 = arith.mulf %452, %462 : vector<8x32xf32>
    %cst_226 = arith.constant dense<0.000000e+00> : vector<8x32xf32>
    %464 = tpu.matmul %463, %446, %cst_226 {dimension_numbers = #tpu.dot_dimension_numbers<[1], [0], [0], [1], [0, 0, 1, 1], [], []>} : vector<8x32xf32>, vector<32x32xf32>, vector<8x32xf32> -> vector<8x32xf32>
    %465 = vector.broadcast %447 : vector<1x32xf32> to vector<8x32xf32>
    %466 = arith.addf %464, %465 : vector<8x32xf32>
    %c0_227 = arith.constant 0 : index
    %c0_228 = arith.constant 0 : index
    %467 = vector.load %arg29[%c0_227, %c0_228] : memref<8x32xf32, #tpu.memory_space<vmem>>, vector<8x32xf32>
    tpu.vector_store %arg29[%c0_227, %c0_228], %466 {strides = array<i32>} : memref<8x32xf32, #tpu.memory_space<vmem>>, vector<8x32xf32>,
    return
  }
  func.func @transform_0(%arg0: i32) -> (i32, i32) {
    %c0_i32 = arith.constant 0 : i32
    %c0_i32_0 = arith.constant 0 : i32
    return %c0_i32, %arg0 : i32, i32
  }
  func.func @transform_1(%arg0: i32) -> (i32, i32) {
    %c0_i32 = arith.constant 0 : i32
    %c0_i32_0 = arith.constant 0 : i32
    return %arg0, %c0_i32 : i32, i32
  }
  func.func @transform_2(%arg0: i32) -> (i32, i32) {
    %c0_i32 = arith.constant 0 : i32
    %c0_i32_0 = arith.constant 0 : i32
    %c0_i32_1 = arith.constant 0 : i32
    return %c0_i32, %c0_i32_0 : i32, i32
  }
  func.func @transform_3(%arg0: i32) -> (i32, i32) {
    %c0_i32 = arith.constant 0 : i32
    %c0_i32_0 = arith.constant 0 : i32
    %c0_i32_1 = arith.constant 0 : i32
    return %c0_i32, %c0_i32_0 : i32, i32
  }
  func.func @transform_4(%arg0: i32) -> (i32, i32) {
    %c0_i32 = arith.constant 0 : i32
    %c0_i32_0 = arith.constant 0 : i32
    %c0_i32_1 = arith.constant 0 : i32
    return %c0_i32, %c0_i32_0 : i32, i32
  }
  func.func @transform_5(%arg0: i32) -> (i32, i32) {
    %c0_i32 = arith.constant 0 : i32
    %c0_i32_0 = arith.constant 0 : i32
    %c0_i32_1 = arith.constant 0 : i32
    return %c0_i32, %c0_i32_0 : i32, i32
  }
  func.func @transform_6(%arg0: i32) -> (i32, i32) {
    %c0_i32 = arith.constant 0 : i32
    %c0_i32_0 = arith.constant 0 : i32
    %c0_i32_1 = arith.constant 0 : i32
    return %c0_i32, %c0_i32_0 : i32, i32
  }
  func.func @transform_7(%arg0: i32) -> (i32, i32) {
    %c0_i32 = arith.constant 0 : i32
    %c0_i32_0 = arith.constant 0 : i32
    %c0_i32_1 = arith.constant 0 : i32
    return %c0_i32, %c0_i32_0 : i32, i32
  }
  func.func @transform_8(%arg0: i32) -> (i32, i32) {
    %c0_i32 = arith.constant 0 : i32
    %c0_i32_0 = arith.constant 0 : i32
    %c0_i32_1 = arith.constant 0 : i32
    return %c0_i32, %c0_i32_0 : i32, i32
  }
  func.func @transform_9(%arg0: i32) -> (i32, i32) {
    %c0_i32 = arith.constant 0 : i32
    %c0_i32_0 = arith.constant 0 : i32
    %c0_i32_1 = arith.constant 0 : i32
    return %c0_i32, %c0_i32_0 : i32, i32
  }
  func.func @transform_10(%arg0: i32) -> (i32, i32, i32) {
    %c0_i32 = arith.constant 0 : i32
    %c0_i32_0 = arith.constant 0 : i32
    %c0_i32_1 = arith.constant 0 : i32
    %c0_i32_2 = arith.constant 0 : i32
    return %c0_i32, %c0_i32_0, %c0_i32_1 : i32, i32, i32
  }
  func.func @transform_11(%arg0: i32) -> (i32, i32, i32) {
    %c0_i32 = arith.constant 0 : i32
    %c0_i32_0 = arith.constant 0 : i32
    %c0_i32_1 = arith.constant 0 : i32
    %c0_i32_2 = arith.constant 0 : i32
    return %c0_i32, %c0_i32_0, %c0_i32_1 : i32, i32, i32
  }
  func.func @transform_12(%arg0: i32) -> (i32, i32, i32) {
    %c0_i32 = arith.constant 0 : i32
    %c0_i32_0 = arith.constant 0 : i32
    %c0_i32_1 = arith.constant 0 : i32
    %c0_i32_2 = arith.constant 0 : i32
    return %c0_i32, %c0_i32_0, %c0_i32_1 : i32, i32, i32
  }
  func.func @transform_13(%arg0: i32) -> (i32, i32, i32) {
    %c0_i32 = arith.constant 0 : i32
    %c0_i32_0 = arith.constant 0 : i32
    %c0_i32_1 = arith.constant 0 : i32
    %c0_i32_2 = arith.constant 0 : i32
    return %c0_i32, %c0_i32_0, %c0_i32_1 : i32, i32, i32
  }
  func.func @transform_14(%arg0: i32) -> (i32, i32, i32) {
    %c0_i32 = arith.constant 0 : i32
    %c0_i32_0 = arith.constant 0 : i32
    %c0_i32_1 = arith.constant 0 : i32
    %c0_i32_2 = arith.constant 0 : i32
    return %c0_i32, %c0_i32_0, %c0_i32_1 : i32, i32, i32
  }
  func.func @transform_15(%arg0: i32) -> (i32, i32, i32) {
    %c0_i32 = arith.constant 0 : i32
    %c0_i32_0 = arith.constant 0 : i32
    %c0_i32_1 = arith.constant 0 : i32
    %c0_i32_2 = arith.constant 0 : i32
    return %c0_i32, %c0_i32_0, %c0_i32_1 : i32, i32, i32
  }
  func.func @transform_16(%arg0: i32) -> (i32, i32, i32) {
    %c0_i32 = arith.constant 0 : i32
    %c0_i32_0 = arith.constant 0 : i32
    %c0_i32_1 = arith.constant 0 : i32
    %c0_i32_2 = arith.constant 0 : i32
    return %c0_i32, %c0_i32_0, %c0_i32_1 : i32, i32, i32
  }
  func.func @transform_17(%arg0: i32) -> (i32, i32, i32) {
    %c0_i32 = arith.constant 0 : i32
    %c0_i32_0 = arith.constant 0 : i32
    %c0_i32_1 = arith.constant 0 : i32
    %c0_i32_2 = arith.constant 0 : i32
    return %c0_i32, %c0_i32_0, %c0_i32_1 : i32, i32, i32
  }
  func.func @transform_18(%arg0: i32) -> (i32, i32, i32) {
    %c0_i32 = arith.constant 0 : i32
    %c0_i32_0 = arith.constant 0 : i32
    %c0_i32_1 = arith.constant 0 : i32
    %c0_i32_2 = arith.constant 0 : i32
    return %c0_i32, %c0_i32_0, %c0_i32_1 : i32, i32, i32
  }
  func.func @transform_19(%arg0: i32) -> (i32, i32, i32) {
    %c0_i32 = arith.constant 0 : i32
    %c0_i32_0 = arith.constant 0 : i32
    %c0_i32_1 = arith.constant 0 : i32
    %c0_i32_2 = arith.constant 0 : i32
    return %c0_i32, %c0_i32_0, %c0_i32_1 : i32, i32, i32
  }
  func.func @transform_20(%arg0: i32) -> (i32, i32, i32) {
    %c0_i32 = arith.constant 0 : i32
    %c0_i32_0 = arith.constant 0 : i32
    %c0_i32_1 = arith.constant 0 : i32
    %c0_i32_2 = arith.constant 0 : i32
    return %c0_i32, %c0_i32_0, %c0_i32_1 : i32, i32, i32
  }
  func.func @transform_21(%arg0: i32) -> (i32, i32, i32) {
    %c0_i32 = arith.constant 0 : i32
    %c0_i32_0 = arith.constant 0 : i32
    %c0_i32_1 = arith.constant 0 : i32
    %c0_i32_2 = arith.constant 0 : i32
    return %c0_i32, %c0_i32_0, %c0_i32_1 : i32, i32, i32
  }
  func.func @transform_22(%arg0: i32) -> (i32, i32) {
    %c0_i32 = arith.constant 0 : i32
    %c0_i32_0 = arith.constant 0 : i32
    %c0_i32_1 = arith.constant 0 : i32
    return %c0_i32, %c0_i32_0 : i32, i32
  }
  func.func @transform_23(%arg0: i32) -> (i32, i32) {
    %c0_i32 = arith.constant 0 : i32
    %c0_i32_0 = arith.constant 0 : i32
    %c0_i32_1 = arith.constant 0 : i32
    return %c0_i32, %c0_i32_0 : i32, i32
  }
  func.func @transform_24(%arg0: i32) -> (i32, i32) {
    %c0_i32 = arith.constant 0 : i32
    %c0_i32_0 = arith.constant 0 : i32
    %c0_i32_1 = arith.constant 0 : i32
    return %c0_i32, %c0_i32_0 : i32, i32
  }
  func.func @transform_25(%arg0: i32) -> (i32, i32) {
    %c0_i32 = arith.constant 0 : i32
    %c0_i32_0 = arith.constant 0 : i32
    %c0_i32_1 = arith.constant 0 : i32
    return %c0_i32, %c0_i32_0 : i32, i32
  }
  func.func @transform_26(%arg0: i32) -> (i32, i32) {
    %c0_i32 = arith.constant 0 : i32
    %c0_i32_0 = arith.constant 0 : i32
    %c0_i32_1 = arith.constant 0 : i32
    return %c0_i32, %c0_i32_0 : i32, i32
  }
  func.func @transform_27(%arg0: i32) -> (i32, i32) {
    %c0_i32 = arith.constant 0 : i32
    %c0_i32_0 = arith.constant 0 : i32
    %c0_i32_1 = arith.constant 0 : i32
    return %c0_i32, %c0_i32_0 : i32, i32
  }
  func.func @transform_28(%arg0: i32) -> (i32, i32) {
    %c0_i32 = arith.constant 0 : i32
    %c0_i32_0 = arith.constant 0 : i32
    return %arg0, %c0_i32 : i32, i32
  }
}

</mosaic_0001>

<llo_original>
// kernel: squeeze.4
$region0: #{squeeze.4}
  %s0 = inlined_call_operand.vmem [shape: bf16[2,8,1,4], index: 0, kind: input, shape index: {}]
  %s1 = inlined_call_operand.vmem [shape: bf16[16,4], index: 1, kind: output, shape index: {}]
  $region1: #{squeeze.4} parent=0
    #allocation0 [shape = 'u8[4096]{0}', space=vmem, size = 0x1000, scoped, tag = 'scoped mem for output reshape']
    #allocation1 [shape = 'u8[16384]{0}', space=vmem, size = 0x4000, scoped, tag = 'scoped mem for input reshape']
    %s3 = ssub.s32 4, 1
    %s4 = scalar_lea.vmem %s0, 3
    %s5 = sshrl.u32 %s3, 1
    %s6 = sor.u32 %s3, %s5
    %s7 = sand.u32 %s6, 85
    %s8 = sshrl.u32 %s7, 1
    %s9 = sor.u32 %s7, %s8
    %s10 = sand.u32 51, %s9
    %s11 = sshrl.u32 %s10, 2
    %s12 = sor.u32 %s10, %s11
    %s13 = sand.u32 15, %s12
    %v14 = vld [vmem:[%s4] sm:%s13]
    %v15 = vunpack.c.l.bf16 %v14
    %v16 = vunpack.c.h.bf16 %v14
    %s17 = scalar_lea.vmem [#allocation1], 24
    %18 = vst [vmem:[%s17] sm:%s3] %v15
    %s19 = scalar_lea.vmem %s0, 2
    %s20 = sshrl.u32 %s3, 1
    %s21 = sor.u32 %s3, %s20
    %s22 = sand.u32 %s21, 85
    %s23 = sshrl.u32 %s22, 1
    %s24 = sor.u32 %s22, %s23
    %s25 = sand.u32 51, %s24
    %s26 = sshrl.u32 %s25, 2
    %s27 = sor.u32 %s25, %s26
    %s28 = sand.u32 15, %s27
    %v29 = vld [vmem:[%s19] sm:%s28]
    %v30 = vunpack.c.l.bf16 %v29
    %v31 = vunpack.c.h.bf16 %v29
    %s32 = scalar_lea.vmem [#allocation1], 16
    %33 = vst [vmem:[%s32] sm:%s3] %v30
    %s34 = scalar_lea.vmem %s0, 1
    %s35 = sshrl.u32 %s3, 1
    %s36 = sor.u32 %s3, %s35
    %s37 = sand.u32 %s36, 85
    %s38 = sshrl.u32 %s37, 1
    %s39 = sor.u32 %s37, %s38
    %s40 = sand.u32 51, %s39
    %s41 = sshrl.u32 %s40, 2
    %s42 = sor.u32 %s40, %s41
    %s43 = sand.u32 15, %s42
    %v44 = vld [vmem:[%s34] sm:%s43]
    %v45 = vunpack.c.l.bf16 %v44
    %v46 = vunpack.c.h.bf16 %v44
    %s47 = scalar_lea.vmem [#allocation1], 8
    %48 = vst [vmem:[%s47] sm:%s3] %v45
    %s49 = sshrl.u32 %s3, 1
    %s50 = sor.u32 %s3, %s49
    %s51 = sand.u32 %s50, 85
    %s52 = sshrl.u32 %s51, 1
    %s53 = sor.u32 %s51, %s52
    %s54 = sand.u32 51, %s53
    %s55 = sshrl.u32 %s54, 2
    %s56 = sor.u32 %s54, %s55
    %s57 = sand.u32 15, %s56
    %v58 = vld [vmem:[%s0] sm:%s57]
    %v59 = vunpack.c.l.bf16 %v58
    %v60 = vunpack.c.h.bf16 %v58
    %61 = vst [vmem:[#allocation1] sm:%s3] %v59
    %v62 = vld [vmem:[#allocation1] ss:$8 sm:$0xf]
    %vm63 = vcmask 64512
    %64 = vst.msk [vmem:[#allocation0] sm:$0xf] %vm63, %v62
    %s65 = scalar_lea.vmem [#allocation1], 1
    %v66 = vld [vmem:[%s65] ss:$8 sm:$0xf]
    %67 = vrot.lane.b32.xlu0 %v66, 8
    %v68 = vpop.permute.xlu0 %67
    %vm69 = vcmask 130112
    %70 = vst.msk [vmem:[#allocation0] sm:$0xf] %vm69, %v68
    %s72 = ssub.s32 16, 1
    %v73 = vld [vmem:[#allocation0] sm:%s72]
    %v74 = vpack.c.bf16 0.0, %v73
    %s76 = ssub.s32 4, 1
    %77 = vst [vmem:[%s1] sm:%s76] %v74

// kernel: mul.23
$region0: #{mul.23}
  %s0 = inlined_call_operand.vmem [shape: f32[2,8], index: 0, kind: input, shape index: {}]
  %s1 = inlined_call_operand.vmem [shape: f32[16], index: 1, kind: output, shape index: {}]
  $region1: #{mul.23} parent=0
    #allocation0 [shape = 'u8[4096]{0}', space=vmem, size = 0x1000, scoped, tag = 'scoped mem for output reshape']
    #allocation1 [shape = 'u8[4096]{0}', space=vmem, size = 0x1000, scoped, tag = 'scoped mem for input reshape']
    %s3 = ssub.s32 4, 1
    %v4 = vld [vmem:[%s0] sm:%s3]
    %5 = vst [vmem:[#allocation1] sm:%s3] %v4
    %v6 = vld [vmem:[#allocation1] sm:$0x1]
    %vm7 = vcmask 64512
    %8 = vst.msk [vmem:[#allocation0] sm:$0x1] %vm7, %v6
    %s9 = scalar_lea.vmem [#allocation1], 1
    %v10 = vld [vmem:[%s9] sm:$0x1]
    %11 = vrot.lane.b32.xlu0 %v10, 8
    %v12 = vpop.permute.xlu0 %11
    %vm13 = vcmask 130112
    %14 = vst.msk [vmem:[#allocation0] sm:$0x1] %vm13, %v12
    %s16 = ssub.s32 2, 1
    %v17 = vld [vmem:[#allocation0] sm:%s16]
    %s19 = ssub.s32 2, 1
    %20 = vst [vmem:[%s1] sm:%s19] %v17

// kernel: squeeze.4
$region0: #{squeeze.4}
  %s0 = inlined_call_operand.vmem [shape: bf16[2,8,1,4], index: 0, kind: input, shape index: {}]
  %s1 = inlined_call_operand.vmem [shape: bf16[16,4], index: 1, kind: output, shape index: {}]
  $region1: #{squeeze.4} parent=0
    #allocation0 [shape = 'u8[4096]{0}', space=vmem, size = 0x1000, scoped, tag = 'scoped mem for output reshape']
    #allocation1 [shape = 'u8[16384]{0}', space=vmem, size = 0x4000, scoped, tag = 'scoped mem for input reshape']
    %s3 = ssub.s32 4, 1
    %s4 = scalar_lea.vmem %s0, 3
    %s5 = sshrl.u32 %s3, 1
    %s6 = sor.u32 %s3, %s5
    %s7 = sand.u32 %s6, 85
    %s8 = sshrl.u32 %s7, 1
    %s9 = sor.u32 %s7, %s8
    %s10 = sand.u32 51, %s9
    %s11 = sshrl.u32 %s10, 2
    %s12 = sor.u32 %s10, %s11
    %s13 = sand.u32 15, %s12
    %v14 = vld [vmem:[%s4] sm:%s13]
    %v15 = vunpack.c.l.bf16 %v14
    %v16 = vunpack.c.h.bf16 %v14
    %s17 = scalar_lea.vmem [#allocation1], 24
    %18 = vst [vmem:[%s17] sm:%s3] %v15
    %s19 = scalar_lea.vmem %s0, 2
    %s20 = sshrl.u32 %s3, 1
    %s21 = sor.u32 %s3, %s20
    %s22 = sand.u32 %s21, 85
    %s23 = sshrl.u32 %s22, 1
    %s24 = sor.u32 %s22, %s23
    %s25 = sand.u32 51, %s24
    %s26 = sshrl.u32 %s25, 2
    %s27 = sor.u32 %s25, %s26
    %s28 = sand.u32 15, %s27
    %v29 = vld [vmem:[%s19] sm:%s28]
    %v30 = vunpack.c.l.bf16 %v29
    %v31 = vunpack.c.h.bf16 %v29
    %s32 = scalar_lea.vmem [#allocation1], 16
    %33 = vst [vmem:[%s32] sm:%s3] %v30
    %s34 = scalar_lea.vmem %s0, 1
    %s35 = sshrl.u32 %s3, 1
    %s36 = sor.u32 %s3, %s35
    %s37 = sand.u32 %s36, 85
    %s38 = sshrl.u32 %s37, 1
    %s39 = sor.u32 %s37, %s38
    %s40 = sand.u32 51, %s39
    %s41 = sshrl.u32 %s40, 2
    %s42 = sor.u32 %s40, %s41
    %s43 = sand.u32 15, %s42
    %v44 = vld [vmem:[%s34] sm:%s43]
    %v45 = vunpack.c.l.bf16 %v44
    %v46 = vunpack.c.h.bf16 %v44
    %s47 = scalar_lea.vmem [#allocation1], 8
    %48 = vst [vmem:[%s47] sm:%s3] %v45
    %s49 = sshrl.u32 %s3, 1
    %s50 = sor.u32 %s3, %s49
    %s51 = sand.u32 %s50, 85
    %s52 = sshrl.u32 %s51, 1
    %s53 = sor.u32 %s51, %s52
    %s54 = sand.u32 51, %s53
    %s55 = sshrl.u32 %s54, 2
    %s56 = sor.u32 %s54, %s55
    %s57 = sand.u32 15, %s56
    %v58 = vld [vmem:[%s0] sm:%s57]
    %v59 = vunpack.c.l.bf16 %v58
    %v60 = vunpack.c.h.bf16 %v58
    %61 = vst [vmem:[#allocation1] sm:%s3] %v59
    %v62 = vld [vmem:[#allocation1] ss:$8 sm:$0xf]
    %vm63 = vcmask 64512
    %64 = vst.msk [vmem:[#allocation0] sm:$0xf] %vm63, %v62
    %s65 = scalar_lea.vmem [#allocation1], 1
    %v66 = vld [vmem:[%s65] ss:$8 sm:$0xf]
    %67 = vrot.lane.b32.xlu0 %v66, 8
    %v68 = vpop.permute.xlu0 %67
    %vm69 = vcmask 130112
    %70 = vst.msk [vmem:[#allocation0] sm:$0xf] %vm69, %v68
    %s72 = ssub.s32 16, 1
    %v73 = vld [vmem:[#allocation0] sm:%s72]
    %v74 = vpack.c.bf16 0.0, %v73
    %s76 = ssub.s32 4, 1
    %77 = vst [vmem:[%s1] sm:%s76] %v74

// kernel: mul.23
$region0: #{mul.23}
  %s0 = inlined_call_operand.vmem [shape: f32[2,8], index: 0, kind: input, shape index: {}]
  %s1 = inlined_call_operand.vmem [shape: f32[16], index: 1, kind: output, shape index: {}]
  $region1: #{mul.23} parent=0
    #allocation0 [shape = 'u8[4096]{0}', space=vmem, size = 0x1000, scoped, tag = 'scoped mem for output reshape']
    #allocation1 [shape = 'u8[4096]{0}', space=vmem, size = 0x1000, scoped, tag = 'scoped mem for input reshape']
    %s3 = ssub.s32 4, 1
    %v4 = vld [vmem:[%s0] sm:%s3]
    %5 = vst [vmem:[#allocation1] sm:%s3] %v4
    %v6 = vld [vmem:[#allocation1] sm:$0x1]
    %vm7 = vcmask 64512
    %8 = vst.msk [vmem:[#allocation0] sm:$0x1] %vm7, %v6
    %s9 = scalar_lea.vmem [#allocation1], 1
    %v10 = vld [vmem:[%s9] sm:$0x1]
    %11 = vrot.lane.b32.xlu0 %v10, 8
    %v12 = vpop.permute.xlu0 %11
    %vm13 = vcmask 130112
    %14 = vst.msk [vmem:[#allocation0] sm:$0x1] %vm13, %v12
    %s16 = ssub.s32 2, 1
    %v17 = vld [vmem:[#allocation0] sm:%s16]
    %s19 = ssub.s32 2, 1
    %20 = vst [vmem:[%s1] sm:%s19] %v17

</llo_original>
